<compile_context>
chip_gen: v7x
topology: tpu7x:2x2x1
jax: 0.10.0
libtpu: 0.0.40
codegen_flags: <defaults>
</compile_context>

<pallas_src>
import functools

import jax
import jax.numpy as jnp
from jax.experimental import pallas as pl
from jax.experimental.pallas import tpu as pltpu


def _dgcnn_block_kernel(n_mid, batch_tile, n_valid,
                        x_ref, w1_ref, w2_ref, t_ref, o_ref):
    """One grid step: `batch_tile` point clouds, each (C, Np) with Np % 128 == 0.

    x_ref : (batch_tile, C, Np) f32     input features
    w1_ref: (4C, C)             bf16    [s1*W_self ; s1*W1b_0 ; s1*W1b_1 ; s1*W1b_2]
    w2_ref: (n_mid, C, C)       bf16    s2-scaled conv2 taps
    t_ref : (C, 2)              f32     [t1 | t2] BN shifts (conv biases folded in)
    o_ref : (batch_tile, C, Np) f32
    """
    C = w1_ref.shape[1]
    Np = x_ref.shape[2]
    NEG = jnp.float32(-1e30)

    # Weight / shift tiles are grid-resident; read them once per step.
    w1 = w1_ref[...]                                   # (4C, C) bf16
    t1 = t_ref[:, 0:1]                                 # (C, 1) f32
    t2 = t_ref[:, 1:2]                                 # (C, 1) f32
    t2_full = jnp.broadcast_to(t2, (C, Np))            # hoisted once (conv2 acc seed)

    if n_valid < Np:                                   # static: only when padded
        lane = jax.lax.broadcasted_iota(jnp.int32, (1, Np), 1)
        pad_cols = lane >= n_valid                     # (1, Np) bool

    for b in range(batch_tile):                        # small static unroll
        x = x_ref[b]                                   # (C, Np) f32
        x16 = x.astype(jnp.bfloat16)

        # ---- knn(): negative squared distance matrix (f32 for exact indices) ----
        xx = jnp.sum(x * x, axis=0, keepdims=True)     # (1, Np)
        gram = jax.lax.dot_general(x, x, (((0,), (0,)), ((), ())),
                                   preferred_element_type=jnp.float32)   # (Np, Np)
        dist = 2.0 * gram - xx - xx.T                  # dist[i, j] = -||x_i - x_j||^2
        if n_valid < Np:
            dist = jnp.where(pad_cols, NEG, dist)      # padded points never selected

        # ---- ONE stacked conv1 projection matmul (M = 4C) ----
        proj = jax.lax.dot_general(w1, x16, (((1,), (0,)), ((), ())),
                                   preferred_element_type=jnp.float32)   # (4C, Np)
        self_plus = proj[0:C] + t1                     # s1*(W_self @ x) + t1, broadcast once
        nb16 = proj[C:4 * C].astype(jnp.bfloat16)      # 3 neighbor taps, one cast site
        xcat = jnp.concatenate(
            [nb16[0:C], nb16[C:2 * C], nb16[2 * C:3 * C]], axis=1)       # (C, 3Np) bf16

        # ---- per mid-column: 3 nearest-neighbor selections, one wide-K gather,
        #      BN1+ReLU, and an accumulated conv2 tap ----
        def p_body(p, carry):
            d, y2 = carry
            ohs = []
            for _ in range(3):                         # static unroll of 3
                m = jnp.max(d, axis=-1, keepdims=True)               # (Np, 1)
                oh = d >= m                                           # (Np, Np) bool
                d = jnp.where(oh, NEG, d)                             # mask selection
                ohs.append(oh.astype(jnp.bfloat16))
            oh_cat = jnp.concatenate(ohs, axis=1)                     # (Np, 3Np)
            # gather of the already-projected (and s1-scaled) neighbor features
            g = jax.lax.dot_general(xcat, oh_cat, (((1,), (1,)), ((), ())),
                                    preferred_element_type=jnp.float32)  # (C, Np)
            y1 = jnp.maximum(self_plus - g, 0.0).astype(jnp.bfloat16)    # BN1 + ReLU
            y2 = y2 + jax.lax.dot_general(w2_ref[p], y1, (((1,), (0,)), ((), ())),
                                          preferred_element_type=jnp.float32)
            return d, y2

        _, y2 = jax.lax.fori_loop(0, n_mid, p_body, (dist, t2_full))
        o_ref[b] = jnp.maximum(y2, 0.0).astype(o_ref.dtype)             # BN2 + ReLU


def _pick_batch_tile(B):
    """Amortize per-grid-step overhead while keeping >= 2 parallel grid steps
    (feeds both TensorCores on v7x; no-op on the single-TC v5e/v6e)."""
    if B < 4:
        return 1
    for bt in (8, 4, 2):
        if B % bt == 0 and B // bt >= 2:
            return bt
    return 1


def dgcnn_block_forward(features, params, knn_num=9, batch_tile=None):
    """features: (B, C, N, 1) NCHW  ->  (B, C, N, 1)."""
    assert knn_num in (9, 6)
    B, C, N, W = features.shape
    assert W == 1
    k = knn_num
    assert k <= N, "top-k needs k <= number of points"
    n_mid = k // 3            # width after first conv (3 for k=9, 2 for k=6)

    x = features.reshape(B, C, N).astype(jnp.float32)        # free reshape, NCHW kept
    Np = ((N + 127) // 128) * 128                            # lane-dense point axis
    if Np != N:
        x = jnp.pad(x, ((0, 0), (0, 0), (0, Np - N)))

    if batch_tile is None:
        batch_tile = _pick_batch_tile(B)
    assert B % batch_tile == 0

    eps = 1e-5
    s1 = params["bn1_gamma"] / jnp.sqrt(params["bn1_var"] + eps)
    t1 = params["bn1_beta"] + (params["conv1_b"] - params["bn1_mean"]) * s1
    s2 = params["bn2_gamma"] / jnp.sqrt(params["bn2_var"] + eps)
    t2 = params["bn2_beta"] + (params["conv2_b"] - params["bn2_mean"]) * s2

    # Conv1 weight: PyTorch (C, 2C, 1, 3).  The self half hits every tap of an
    # output column identically, so fold sum_t(W1a_t + W1b_t) into one (C, C)
    # matrix; stack it with the 3 neighbor taps and pre-scale rows by the BN1
    # scale s1 (inference-mode fold) -> a single (4C, C) matmul operand.
    w1 = params["conv1_w"][:, :, 0, :]                        # (C, 2C, 3)
    w1a, w1b = w1[:, :C, :], w1[:, C:, :]                     # (C, C, 3) each
    w_self = jnp.sum(w1a + w1b, axis=-1)                      # (C, C)
    w_stack = jnp.concatenate(
        [w_self, w1b[:, :, 0], w1b[:, :, 1], w1b[:, :, 2]], axis=0)      # (4C, C)
    w_stack = (w_stack * jnp.tile(s1, 4)[:, None]).astype(jnp.bfloat16)

    # Conv2 weight: PyTorch (C, C, 1, n_mid) -> (n_mid, C, C) taps, BN2 scale
    # folded into the output rows; consumed as n_mid accumulated (C,C)@(C,N).
    w2_taps = jnp.transpose(params["conv2_w"][:, :, 0, :], (2, 0, 1))    # (n_mid, C, C)
    w2_taps = (w2_taps * s2[None, :, None]).astype(jnp.bfloat16)

    # Only the two BN shifts (with conv biases folded in) reach the kernel,
    # packed into one (C, 2) tile.
    t_pack = jnp.stack([t1, t2], axis=1).astype(jnp.float32)             # (C, 2)

    kernel = functools.partial(_dgcnn_block_kernel, n_mid, batch_tile, N)

    out = pl.pallas_call(
        kernel,
        out_shape=jax.ShapeDtypeStruct((B, C, Np), jnp.float32),
        grid=(B // batch_tile,),
        in_specs=[
            pl.BlockSpec((batch_tile, C, Np), lambda i: (i, 0, 0)),  # features
            pl.BlockSpec((4 * C, C), lambda i: (0, 0)),              # stacked conv1
            pl.BlockSpec((n_mid, C, C), lambda i: (0, 0, 0)),        # conv2 taps
            pl.BlockSpec((C, 2), lambda i: (0, 0)),                  # BN shifts
        ],
        out_specs=pl.BlockSpec((batch_tile, C, Np), lambda i: (i, 0, 0)),
        compiler_params=pltpu.CompilerParams(dimension_semantics=("parallel",)),
    )(x, w_stack, w2_taps, t_pack)

    return out[:, :, :N].reshape(B, C, N, 1)


def init_params(key, in_channel, knn_num):
    C = in_channel
    n_mid = knn_num // 3
    ks = jax.random.split(key, 8)

    def nrm(k_, shape, scale=0.05):
        return scale * jax.random.normal(k_, shape, dtype=jnp.float32)

    return dict(
        conv1_w=nrm(ks[0], (C, 2 * C, 1, 3)),
        conv1_b=nrm(ks[1], (C,)),
        bn1_gamma=1.0 + nrm(ks[2], (C,)),
        bn1_beta=nrm(ks[3], (C,)),
        bn1_mean=jnp.zeros((C,), jnp.float32),
        bn1_var=jnp.ones((C,), jnp.float32),
        conv2_w=nrm(ks[4], (C, C, 1, n_mid)),
        conv2_b=nrm(ks[5], (C,)),
        bn2_gamma=1.0 + nrm(ks[6], (C,)),
        bn2_beta=nrm(ks[7], (C,)),
        bn2_mean=jnp.zeros((C,), jnp.float32),
        bn2_var=jnp.ones((C,), jnp.float32),
    )


if __name__ == "__main__":
    B, C, N = 4, 32, 128
    knn_num = 9

    key = jax.random.PRNGKey(0)
    k_feat, k_par = jax.random.split(key)
    features = jax.random.normal(k_feat, (B, C, N, 1), dtype=jnp.float32)
    params = init_params(k_par, C, knn_num)

    out = dgcnn_block_forward(features, params, knn_num=knn_num)
    out = jax.block_until_ready(out)

    assert out.shape == (B, C, N, 1), out.shape
    assert bool(jnp.all(jnp.isfinite(out)))
    print("KERNEL_OK")
</pallas_src>

<mosaic_0001>
module attributes {stable_mosaic.version = 11 : i64} {
  func.func @_dgcnn_block_kernel(%arg0: i32, %arg1: memref<2x32x128xf32, #tpu.memory_space<vmem>>, %arg2: memref<128x32xbf16, #tpu.memory_space<vmem>>, %arg3: memref<3x32x32xbf16, #tpu.memory_space<vmem>>, %arg4: memref<32x2xf32, #tpu.memory_space<vmem>>, %arg5: memref<2x32x128xf32, #tpu.memory_space<vmem>>) attributes {dimension_semantics = [#tpu.dimension_semantics<parallel>], iteration_bounds = array<i64: 2>, scalar_prefetch = 0 : i64, scratch_operands = 0 : i64, tpu.core_type = #tpu.core_type<tc>, window_params = [{transform_indices = @transform_0, window_bounds = array<i64: 2, 32, 128>}, {pipeline_mode = #tpu.pipeline_mode<synchronous>, transform_indices = @transform_1, window_bounds = array<i64: 128, 32>}, {pipeline_mode = #tpu.pipeline_mode<synchronous>, transform_indices = @transform_2, window_bounds = array<i64: 3, 32, 32>}, {pipeline_mode = #tpu.pipeline_mode<synchronous>, transform_indices = @transform_3, window_bounds = array<i64: 32, 2>}, {transform_indices = @transform_4, window_bounds = array<i64: 2, 32, 128>}]} {
    %c0 = arith.constant 0 : index
    %c0_0 = arith.constant 0 : index
    %0 = vector.load %arg2[%c0, %c0_0] : memref<128x32xbf16, #tpu.memory_space<vmem>>, vector<128x32xbf16>
    %c0_1 = arith.constant 0 : index
    %c0_2 = arith.constant 0 : index
    %1 = vector.load %arg4[%c0_1, %c0_2] : memref<32x2xf32, #tpu.memory_space<vmem>>, vector<32x1xf32>
    %c0_3 = arith.constant 0 : index
    %c1 = arith.constant 1 : index
    %2 = vector.load %arg4[%c0_3, %c1] : memref<32x2xf32, #tpu.memory_space<vmem>>, vector<32x1xf32>
    %3 = vector.shape_cast %2 : vector<32x1xf32> to vector<32x1xf32>
    %4 = vector.broadcast %3 : vector<32x1xf32> to vector<32x128xf32>
    %c0_4 = arith.constant 0 : index
    %c0_5 = arith.constant 0 : index
    %c0_6 = arith.constant 0 : index
    %5 = vector.load %arg1[%c0_4, %c0_5, %c0_6] : memref<2x32x128xf32, #tpu.memory_space<vmem>>, vector<1x32x128xf32>
    %6 = vector.shape_cast %5 : vector<1x32x128xf32> to vector<32x128xf32>
    %7 = arith.truncf %6 : vector<32x128xf32> to vector<32x128xbf16>
    %8 = arith.mulf %6, %6 : vector<32x128xf32>
    %cst = arith.constant dense<0.000000e+00> : vector<128xf32>
    %9 = vector.multi_reduction <add>, %8, %cst [0] : vector<32x128xf32> to vector<128xf32>
    %10 = vector.shape_cast %9 : vector<128xf32> to vector<1x128xf32>
    %cst_7 = arith.constant dense<0.000000e+00> : vector<128x128xf32>
    %11 = tpu.matmul %6, %6, %cst_7 {dimension_numbers = #tpu.dot_dimension_numbers<[0], [0], [1], [1], [0, 1, 1, 1], [], []>} : vector<32x128xf32>, vector<32x128xf32>, vector<128x128xf32> -> vector<128x128xf32>
    %cst_8 = arith.constant 2.000000e+00 : f32
    %12 = vector.broadcast %cst_8 : f32 to vector<128x128xf32>
    %13 = arith.mulf %12, %11 : vector<128x128xf32>
    %14 = vector.broadcast %10 : vector<1x128xf32> to vector<128x128xf32>
    %15 = arith.subf %13, %14 : vector<128x128xf32>
    %16 = tpu.transpose %10, [1, 0] : vector<1x128xf32> -> vector<128x1xf32>
    %17 = vector.broadcast %16 : vector<128x1xf32> to vector<128x128xf32>
    %18 = arith.subf %15, %17 : vector<128x128xf32>
    %cst_9 = arith.constant dense<0.000000e+00> : vector<128x128xf32>
    %19 = tpu.matmul %0, %7, %cst_9 {dimension_numbers = #tpu.dot_dimension_numbers<[1], [0], [0], [1], [0, 0, 1, 1], [], []>} : vector<128x32xbf16>, vector<32x128xbf16>, vector<128x128xf32> -> vector<128x128xf32>
    %20 = vector.extract_strided_slice %19 {offsets = [0, 0], sizes = [32, 128], strides = [1, 1]} : vector<128x128xf32> to vector<32x128xf32>
    %21 = vector.broadcast %1 : vector<32x1xf32> to vector<32x128xf32>
    %22 = arith.addf %20, %21 : vector<32x128xf32>
    %23 = vector.extract_strided_slice %19 {offsets = [32, 0], sizes = [96, 128], strides = [1, 1]} : vector<128x128xf32> to vector<96x128xf32>
    %24 = arith.truncf %23 : vector<96x128xf32> to vector<96x128xbf16>
    %25 = vector.extract_strided_slice %24 {offsets = [0, 0], sizes = [32, 128], strides = [1, 1]} : vector<96x128xbf16> to vector<32x128xbf16>
    %26 = vector.extract_strided_slice %24 {offsets = [32, 0], sizes = [32, 128], strides = [1, 1]} : vector<96x128xbf16> to vector<32x128xbf16>
    %27 = vector.extract_strided_slice %24 {offsets = [64, 0], sizes = [32, 128], strides = [1, 1]} : vector<96x128xbf16> to vector<32x128xbf16>
    %28 = tpu.concatenate %25, %26, %27 in 1 : vector<32x128xbf16>, vector<32x128xbf16>, vector<32x128xbf16> -> vector<32x384xbf16>
    %cst_10 = arith.constant -1.000000e+30 : f32
    %c0_i32 = arith.constant 0 : i32
    %c3_i32 = arith.constant 3 : i32
    %29 = arith.addi %c0_i32, %c3_i32 : i32
    %c1_i32 = arith.constant 1 : i32
    %30:2 = scf.for %arg6 = %c0_i32 to %29 step %c1_i32 iter_args(%arg7 = %18, %arg8 = %4) -> (vector<128x128xf32>, vector<32x128xf32>)  : i32 {
      %cst_32 = arith.constant dense<0xFF800000> : vector<128xf32>
      %67 = vector.multi_reduction <maximumf>, %arg7, %cst_32 [1] : vector<128x128xf32> to vector<128xf32>
      %68 = vector.shape_cast %67 : vector<128xf32> to vector<128x1xf32>
      %69 = vector.broadcast %68 : vector<128x1xf32> to vector<128x128xf32>
      %70 = arith.cmpf oge, %arg7, %69 : vector<128x128xf32>
      %71 = vector.broadcast %cst_10 : f32 to vector<128x128xf32>
      %72 = arith.select %70, %71, %arg7 : vector<128x128xi1>, vector<128x128xf32>
      %73 = arith.extui %70 : vector<128x128xi1> to vector<128x128xi32>
      %74 = arith.sitofp %73 : vector<128x128xi32> to vector<128x128xf32>
      %75 = arith.truncf %74 : vector<128x128xf32> to vector<128x128xbf16>
      %cst_33 = arith.constant dense<0xFF800000> : vector<128xf32>
      %76 = vector.multi_reduction <maximumf>, %72, %cst_33 [1] : vector<128x128xf32> to vector<128xf32>
      %77 = vector.shape_cast %76 : vector<128xf32> to vector<128x1xf32>
      %78 = vector.broadcast %77 : vector<128x1xf32> to vector<128x128xf32>
      %79 = arith.cmpf oge, %72, %78 : vector<128x128xf32>
      %80 = vector.broadcast %cst_10 : f32 to vector<128x128xf32>
      %81 = arith.select %79, %80, %72 : vector<128x128xi1>, vector<128x128xf32>
      %82 = arith.extui %79 : vector<128x128xi1> to vector<128x128xi32>
      %83 = arith.sitofp %82 : vector<128x128xi32> to vector<128x128xf32>
      %84 = arith.truncf %83 : vector<128x128xf32> to vector<128x128xbf16>
      %cst_34 = arith.constant dense<0xFF800000> : vector<128xf32>
      %85 = vector.multi_reduction <maximumf>, %81, %cst_34 [1] : vector<128x128xf32> to vector<128xf32>
      %86 = vector.shape_cast %85 : vector<128xf32> to vector<128x1xf32>
      %87 = vector.broadcast %86 : vector<128x1xf32> to vector<128x128xf32>
      %88 = arith.cmpf oge, %81, %87 : vector<128x128xf32>
      %89 = vector.broadcast %cst_10 : f32 to vector<128x128xf32>
      %90 = arith.select %88, %89, %81 : vector<128x128xi1>, vector<128x128xf32>
      %91 = arith.extui %88 : vector<128x128xi1> to vector<128x128xi32>
      %92 = arith.sitofp %91 : vector<128x128xi32> to vector<128x128xf32>
      %93 = arith.truncf %92 : vector<128x128xf32> to vector<128x128xbf16>
      %94 = tpu.concatenate %75, %84, %93 in 1 : vector<128x128xbf16>, vector<128x128xbf16>, vector<128x128xbf16> -> vector<128x384xbf16>
      %cst_35 = arith.constant dense<0.000000e+00> : vector<32x128xf32>
      %95 = tpu.matmul %28, %94, %cst_35 {dimension_numbers = #tpu.dot_dimension_numbers<[1], [1], [0], [0], [0, 0, 1, 0], [], []>} : vector<32x384xbf16>, vector<128x384xbf16>, vector<32x128xf32> -> vector<32x128xf32>
      %96 = arith.subf %22, %95 : vector<32x128xf32>
      %cst_36 = arith.constant 0.000000e+00 : f32
      %97 = vector.broadcast %cst_36 : f32 to vector<32x128xf32>
      %98 = arith.maximumf %96, %97 : vector<32x128xf32>
      %99 = arith.truncf %98 : vector<32x128xf32> to vector<32x128xbf16>
      %100 = arith.index_cast %arg6 : i32 to index
      %c0_37 = arith.constant 0 : index
      %c0_38 = arith.constant 0 : index
      %101 = vector.load %arg3[%100, %c0_37, %c0_38] : memref<3x32x32xbf16, #tpu.memory_space<vmem>>, vector<1x32x32xbf16>
      %102 = vector.shape_cast %101 : vector<1x32x32xbf16> to vector<32x32xbf16>
      %cst_39 = arith.constant dense<0.000000e+00> : vector<32x128xf32>
      %103 = tpu.matmul %102, %99, %cst_39 {dimension_numbers = #tpu.dot_dimension_numbers<[1], [0], [0], [1], [0, 0, 1, 1], [], []>} : vector<32x32xbf16>, vector<32x128xbf16>, vector<32x128xf32> -> vector<32x128xf32>
      %104 = arith.addf %arg8, %103 : vector<32x128xf32>
      scf.yield %90, %104 : vector<128x128xf32>, vector<32x128xf32>
    }
    %c3_i32_11 = arith.constant 3 : i32
    %cst_12 = arith.constant 0.000000e+00 : f32
    %31 = vector.broadcast %cst_12 : f32 to vector<32x128xf32>
    %32 = arith.maximumf %30#1, %31 : vector<32x128xf32>
    %c0_13 = arith.constant 0 : index
    %c0_14 = arith.constant 0 : index
    %c0_15 = arith.constant 0 : index
    %33 = vector.load %arg5[%c0_13, %c0_14, %c0_15] : memref<2x32x128xf32, #tpu.memory_space<vmem>>, vector<1x32x128xf32>
    %34 = vector.shape_cast %33 : vector<1x32x128xf32> to vector<32x128xf32>
    %35 = vector.shape_cast %32 : vector<32x128xf32> to vector<1x32x128xf32>
    tpu.vector_store %arg5[%c0_13, %c0_14, %c0_15], %35 {strides = array<i32>} : memref<2x32x128xf32, #tpu.memory_space<vmem>>, vector<1x32x128xf32>,
    %c1_16 = arith.constant 1 : index
    %c0_17 = arith.constant 0 : index
    %c0_18 = arith.constant 0 : index
    %36 = vector.load %arg1[%c1_16, %c0_17, %c0_18] : memref<2x32x128xf32, #tpu.memory_space<vmem>>, vector<1x32x128xf32>
    %37 = vector.shape_cast %36 : vector<1x32x128xf32> to vector<32x128xf32>
    %38 = arith.truncf %37 : vector<32x128xf32> to vector<32x128xbf16>
    %39 = arith.mulf %37, %37 : vector<32x128xf32>
    %cst_19 = arith.constant dense<0.000000e+00> : vector<128xf32>
    %40 = vector.multi_reduction <add>, %39, %cst_19 [0] : vector<32x128xf32> to vector<128xf32>
    %41 = vector.shape_cast %40 : vector<128xf32> to vector<1x128xf32>
    %cst_20 = arith.constant dense<0.000000e+00> : vector<128x128xf32>
    %42 = tpu.matmul %37, %37, %cst_20 {dimension_numbers = #tpu.dot_dimension_numbers<[0], [0], [1], [1], [0, 1, 1, 1], [], []>} : vector<32x128xf32>, vector<32x128xf32>, vector<128x128xf32> -> vector<128x128xf32>
    %cst_21 = arith.constant 2.000000e+00 : f32
    %43 = vector.broadcast %cst_21 : f32 to vector<128x128xf32>
    %44 = arith.mulf %43, %42 : vector<128x128xf32>
    %45 = vector.broadcast %41 : vector<1x128xf32> to vector<128x128xf32>
    %46 = arith.subf %44, %45 : vector<128x128xf32>
    %47 = tpu.transpose %41, [1, 0] : vector<1x128xf32> -> vector<128x1xf32>
    %48 = vector.broadcast %47 : vector<128x1xf32> to vector<128x128xf32>
    %49 = arith.subf %46, %48 : vector<128x128xf32>
    %cst_22 = arith.constant dense<0.000000e+00> : vector<128x128xf32>
    %50 = tpu.matmul %0, %38, %cst_22 {dimension_numbers = #tpu.dot_dimension_numbers<[1], [0], [0], [1], [0, 0, 1, 1], [], []>} : vector<128x32xbf16>, vector<32x128xbf16>, vector<128x128xf32> -> vector<128x128xf32>
    %51 = vector.extract_strided_slice %50 {offsets = [0, 0], sizes = [32, 128], strides = [1, 1]} : vector<128x128xf32> to vector<32x128xf32>
    %52 = vector.broadcast %1 : vector<32x1xf32> to vector<32x128xf32>
    %53 = arith.addf %51, %52 : vector<32x128xf32>
    %54 = vector.extract_strided_slice %50 {offsets = [32, 0], sizes = [96, 128], strides = [1, 1]} : vector<128x128xf32> to vector<96x128xf32>
    %55 = arith.truncf %54 : vector<96x128xf32> to vector<96x128xbf16>
    %56 = vector.extract_strided_slice %55 {offsets = [0, 0], sizes = [32, 128], strides = [1, 1]} : vector<96x128xbf16> to vector<32x128xbf16>
    %57 = vector.extract_strided_slice %55 {offsets = [32, 0], sizes = [32, 128], strides = [1, 1]} : vector<96x128xbf16> to vector<32x128xbf16>
    %58 = vector.extract_strided_slice %55 {offsets = [64, 0], sizes = [32, 128], strides = [1, 1]} : vector<96x128xbf16> to vector<32x128xbf16>
    %59 = tpu.concatenate %56, %57, %58 in 1 : vector<32x128xbf16>, vector<32x128xbf16>, vector<32x128xbf16> -> vector<32x384xbf16>
    %cst_23 = arith.constant -1.000000e+30 : f32
    %c0_i32_24 = arith.constant 0 : i32
    %c3_i32_25 = arith.constant 3 : i32
    %60 = arith.addi %c0_i32_24, %c3_i32_25 : i32
    %c1_i32_26 = arith.constant 1 : i32
    %61:2 = scf.for %arg6 = %c0_i32_24 to %60 step %c1_i32_26 iter_args(%arg7 = %49, %arg8 = %4) -> (vector<128x128xf32>, vector<32x128xf32>)  : i32 {
      %cst_32 = arith.constant dense<0xFF800000> : vector<128xf32>
      %67 = vector.multi_reduction <maximumf>, %arg7, %cst_32 [1] : vector<128x128xf32> to vector<128xf32>
      %68 = vector.shape_cast %67 : vector<128xf32> to vector<128x1xf32>
      %69 = vector.broadcast %68 : vector<128x1xf32> to vector<128x128xf32>
      %70 = arith.cmpf oge, %arg7, %69 : vector<128x128xf32>
      %71 = vector.broadcast %cst_23 : f32 to vector<128x128xf32>
      %72 = arith.select %70, %71, %arg7 : vector<128x128xi1>, vector<128x128xf32>
      %73 = arith.extui %70 : vector<128x128xi1> to vector<128x128xi32>
      %74 = arith.sitofp %73 : vector<128x128xi32> to vector<128x128xf32>
      %75 = arith.truncf %74 : vector<128x128xf32> to vector<128x128xbf16>
      %cst_33 = arith.constant dense<0xFF800000> : vector<128xf32>
      %76 = vector.multi_reduction <maximumf>, %72, %cst_33 [1] : vector<128x128xf32> to vector<128xf32>
      %77 = vector.shape_cast %76 : vector<128xf32> to vector<128x1xf32>
      %78 = vector.broadcast %77 : vector<128x1xf32> to vector<128x128xf32>
      %79 = arith.cmpf oge, %72, %78 : vector<128x128xf32>
      %80 = vector.broadcast %cst_23 : f32 to vector<128x128xf32>
      %81 = arith.select %79, %80, %72 : vector<128x128xi1>, vector<128x128xf32>
      %82 = arith.extui %79 : vector<128x128xi1> to vector<128x128xi32>
      %83 = arith.sitofp %82 : vector<128x128xi32> to vector<128x128xf32>
      %84 = arith.truncf %83 : vector<128x128xf32> to vector<128x128xbf16>
      %cst_34 = arith.constant dense<0xFF800000> : vector<128xf32>
      %85 = vector.multi_reduction <maximumf>, %81, %cst_34 [1] : vector<128x128xf32> to vector<128xf32>
      %86 = vector.shape_cast %85 : vector<128xf32> to vector<128x1xf32>
      %87 = vector.broadcast %86 : vector<128x1xf32> to vector<128x128xf32>
      %88 = arith.cmpf oge, %81, %87 : vector<128x128xf32>
      %89 = vector.broadcast %cst_23 : f32 to vector<128x128xf32>
      %90 = arith.select %88, %89, %81 : vector<128x128xi1>, vector<128x128xf32>
      %91 = arith.extui %88 : vector<128x128xi1> to vector<128x128xi32>
      %92 = arith.sitofp %91 : vector<128x128xi32> to vector<128x128xf32>
      %93 = arith.truncf %92 : vector<128x128xf32> to vector<128x128xbf16>
      %94 = tpu.concatenate %75, %84, %93 in 1 : vector<128x128xbf16>, vector<128x128xbf16>, vector<128x128xbf16> -> vector<128x384xbf16>
      %cst_35 = arith.constant dense<0.000000e+00> : vector<32x128xf32>
      %95 = tpu.matmul %59, %94, %cst_35 {dimension_numbers = #tpu.dot_dimension_numbers<[1], [1], [0], [0], [0, 0, 1, 0], [], []>} : vector<32x384xbf16>, vector<128x384xbf16>, vector<32x128xf32> -> vector<32x128xf32>
      %96 = arith.subf %53, %95 : vector<32x128xf32>
      %cst_36 = arith.constant 0.000000e+00 : f32
      %97 = vector.broadcast %cst_36 : f32 to vector<32x128xf32>
      %98 = arith.maximumf %96, %97 : vector<32x128xf32>
      %99 = arith.truncf %98 : vector<32x128xf32> to vector<32x128xbf16>
      %100 = arith.index_cast %arg6 : i32 to index
      %c0_37 = arith.constant 0 : index
      %c0_38 = arith.constant 0 : index
      %101 = vector.load %arg3[%100, %c0_37, %c0_38] : memref<3x32x32xbf16, #tpu.memory_space<vmem>>, vector<1x32x32xbf16>
      %102 = vector.shape_cast %101 : vector<1x32x32xbf16> to vector<32x32xbf16>
      %cst_39 = arith.constant dense<0.000000e+00> : vector<32x128xf32>
      %103 = tpu.matmul %102, %99, %cst_39 {dimension_numbers = #tpu.dot_dimension_numbers<[1], [0], [0], [1], [0, 0, 1, 1], [], []>} : vector<32x32xbf16>, vector<32x128xbf16>, vector<32x128xf32> -> vector<32x128xf32>
      %104 = arith.addf %arg8, %103 : vector<32x128xf32>
      scf.yield %90, %104 : vector<128x128xf32>, vector<32x128xf32>
    }
    %c3_i32_27 = arith.constant 3 : i32
    %cst_28 = arith.constant 0.000000e+00 : f32
    %62 = vector.broadcast %cst_28 : f32 to vector<32x128xf32>
    %63 = arith.maximumf %61#1, %62 : vector<32x128xf32>
    %c1_29 = arith.constant 1 : index
    %c0_30 = arith.constant 0 : index
    %c0_31 = arith.constant 0 : index
    %64 = vector.load %arg5[%c1_29, %c0_30, %c0_31] : memref<2x32x128xf32, #tpu.memory_space<vmem>>, vector<1x32x128xf32>
    %65 = vector.shape_cast %64 : vector<1x32x128xf32> to vector<32x128xf32>
    %66 = vector.shape_cast %63 : vector<32x128xf32> to vector<1x32x128xf32>
    tpu.vector_store %arg5[%c1_29, %c0_30, %c0_31], %66 {strides = array<i32>} : memref<2x32x128xf32, #tpu.memory_space<vmem>>, vector<1x32x128xf32>,
    return
  }
  func.func @transform_0(%arg0: i32) -> (i32, i32, i32) {
    %c0_i32 = arith.constant 0 : i32
    %c0_i32_0 = arith.constant 0 : i32
    %c0_i32_1 = arith.constant 0 : i32
    return %arg0, %c0_i32, %c0_i32_0 : i32, i32, i32
  }
  func.func @transform_1(%arg0: i32) -> (i32, i32) {
    %c0_i32 = arith.constant 0 : i32
    %c0_i32_0 = arith.constant 0 : i32
    %c0_i32_1 = arith.constant 0 : i32
    return %c0_i32, %c0_i32_0 : i32, i32
  }
  func.func @transform_2(%arg0: i32) -> (i32, i32, i32) {
    %c0_i32 = arith.constant 0 : i32
    %c0_i32_0 = arith.constant 0 : i32
    %c0_i32_1 = arith.constant 0 : i32
    %c0_i32_2 = arith.constant 0 : i32
    return %c0_i32, %c0_i32_0, %c0_i32_1 : i32, i32, i32
  }
  func.func @transform_3(%arg0: i32) -> (i32, i32) {
    %c0_i32 = arith.constant 0 : i32
    %c0_i32_0 = arith.constant 0 : i32
    %c0_i32_1 = arith.constant 0 : i32
    return %c0_i32, %c0_i32_0 : i32, i32
  }
  func.func @transform_4(%arg0: i32) -> (i32, i32, i32) {
    %c0_i32 = arith.constant 0 : i32
    %c0_i32_0 = arith.constant 0 : i32
    %c0_i32_1 = arith.constant 0 : i32
    return %arg0, %c0_i32, %c0_i32_0 : i32, i32, i32
  }
}

</mosaic_0001>

<llo_original>
// kernel: tpu_custom_call.1
$region0: #{tpu_custom_call.1}
  #allocation0 [shape = 'u32[]', space=smem, size = 0x4, offset = 0x4, fixed_abs, tag = 'smem constant byte address 0x4 - core index']
  #allocation1 [shape = 'u32[144,128]{1,0:T(1,128)}', space=vmem, size = 0x12000, scoped, tag = 'internal scratch']
  %s0 = inlined_call_operand.hbm [shape: f32[4,32,128], index: 0, kind: input, shape index: {}]
  %s1 = inlined_call_operand.vmem [shape: bf16[128,32], index: 1, kind: input, shape index: {}]
  %s2 = inlined_call_operand.vmem [shape: bf16[3,32,32], index: 2, kind: input, shape index: {}]
  %s3 = inlined_call_operand.vmem [shape: f32[32,2], index: 3, kind: input, shape index: {}]
  %s4 = inlined_call_operand.hbm [shape: f32[4,32,128], index: 4, kind: output, shape index: {}]
  %s5 = sld [smem:[#allocation0]]
  $region67: #{tpu_custom_call.1} parent=0
    _
  %s7 = ssub.s32 1, %s5
  %s8 = scalar_select 0, %s7, %s5
  $region1: #{tpu_custom_call.1} parent=0
    #allocation2 [shape = 'u8[65536]{0}', space=vmem, size = 0x10000, scoped, tag = 'input window, operand 0']
    #allocation3 [shape = 's32[2]{0}', space=sflag, size = 0x8, scoped, tag = 'scoped memory for tpu_custom_call.1']
    #allocation4 [shape = 's32[2]{0}', space=sflag, size = 0x8, scoped, tag = 'scoped memory for tpu_custom_call.1']
    #allocation5 [shape = 'u8[65536]{0}', space=vmem, size = 0x10000, scoped, tag = 'output window, operand 0']
    %9 = vsyncpa [#allocation3], 0
    %s10 = scalar_lea.sflag [#allocation3], 1
    %11 = vsyncpa %s10, 0
    %12 = vsyncpa [#allocation4], 0
    %s13 = scalar_lea.sflag [#allocation4], 1
    %14 = vsyncpa %s13, 0
    loop: start=0, step=1, limit=4
    $region2: #{tpu_custom_call.1} parent=1 // loop_pre_header
      _
    $region3: #{tpu_custom_call.1} parent=1 // loop_header
      %s16 = sphi 0, %s20
      %p17 = scmp.ge.s32.totalorder %s16, 4
      %s26 = sphi 0, %s28
      %s29 = sphi 0, %s26
      %s30 = sphi 0, %s29
      %s46 = sphi 0, %s30
      %s50 = sphi 0, %s50
      %s52 = sphi 0, %s50
      %s53 = sphi 0, %s52
      %s67 = sphi 0, %s53
      %s71 = sphi 0, %s71
      %s73 = sphi 0, %s71
      %s74 = sphi 0, %s73
      %s88 = sphi 0, %s74
      %s92 = sphi 0, %s92
      %s94 = sphi 0, %s92
      %s95 = sphi 0, %s94
      %s109 = sphi 0, %s95
      %s115 = sphi 0, %s117
      %s118 = sphi 0, %s115
      %s119 = sphi 0, %s118
      %s135 = sphi 0, %s119
    $region4: #{tpu_custom_call.1} parent=1 // loop_header_branch
      %19 = sbr.rel (%p17) target = $region8
    $region5: #{tpu_custom_call.1} parent=1 // loop_body
      %s21 = ssub.s32 %s16, 1
      %s22 = ssub.s32 %s16, 2
      %s23 = sadd.s32 %s16, 1
      %s24 = ssub.s32 %s16, %s23
      %p25 = scmp.eq.s32.totalorder %s24, 0
      %s27 = sadd.s32 %s26, 1
      %s28 = scalar_select %p25, %s26, %s27
      %p31 = pneg %p25
      %p32 = scmp.eq.s32.totalorder %s16, 1
      %p33 = por %p31, %p32
      %p34 = scmp.ne.s32.totalorder %s26, %s29
      %p35 = scmp.eq.s32.totalorder %s16, 0
      %p36 = por %p34, %p35
      %p37 = scmp.ne.s32.totalorder %s26, %s29
      %p38 = scmp.eq.s32.totalorder %s21, 1
      %p39 = por %p37, %p38
      %p40 = scmp.ne.s32.totalorder %s29, %s30
      %p41 = scmp.eq.s32.totalorder %s21, 0
      %p42 = por %p40, %p41
      %p43 = scmp.ne.s32.totalorder %s29, %s30
      %p44 = scmp.eq.s32.totalorder %s22, 1
      %p45 = por %p43, %p44
      %p47 = scmp.ne.s32.totalorder %s30, %s46
      %p48 = scmp.eq.s32.totalorder %s22, 0
      %p49 = por %p47, %p48
      %s51 = sadd.s32 %s50, 1
      %p54 = scmp.eq.s32.totalorder %s16, 1
      %p55 = scmp.ne.s32.totalorder %s50, %s52
      %p56 = scmp.eq.s32.totalorder %s16, 0
      %p57 = por %p55, %p56
      %p58 = scmp.ne.s32.totalorder %s50, %s52
      %p59 = scmp.eq.s32.totalorder %s21, 1
      %p60 = por %p58, %p59
      %p61 = scmp.ne.s32.totalorder %s52, %s53
      %p62 = scmp.eq.s32.totalorder %s21, 0
      %p63 = por %p61, %p62
      %p64 = scmp.ne.s32.totalorder %s52, %s53
      %p65 = scmp.eq.s32.totalorder %s22, 1
      %p66 = por %p64, %p65
      %p68 = scmp.ne.s32.totalorder %s53, %s67
      %p69 = scmp.eq.s32.totalorder %s22, 0
      %p70 = por %p68, %p69
      %s72 = sadd.s32 %s71, 1
      %p75 = scmp.eq.s32.totalorder %s16, 1
      %p76 = scmp.ne.s32.totalorder %s71, %s73
      %p77 = scmp.eq.s32.totalorder %s16, 0
      %p78 = por %p76, %p77
      %p79 = scmp.ne.s32.totalorder %s71, %s73
      %p80 = scmp.eq.s32.totalorder %s21, 1
      %p81 = por %p79, %p80
      %p82 = scmp.ne.s32.totalorder %s73, %s74
      %p83 = scmp.eq.s32.totalorder %s21, 0
      %p84 = por %p82, %p83
      %p85 = scmp.ne.s32.totalorder %s73, %s74
      %p86 = scmp.eq.s32.totalorder %s22, 1
      %p87 = por %p85, %p86
      %p89 = scmp.ne.s32.totalorder %s74, %s88
      %p90 = scmp.eq.s32.totalorder %s22, 0
      %p91 = por %p89, %p90
      %s93 = sadd.s32 %s92, 1
      %p96 = scmp.eq.s32.totalorder %s16, 1
      %p97 = scmp.ne.s32.totalorder %s92, %s94
      %p98 = scmp.eq.s32.totalorder %s16, 0
      %p99 = por %p97, %p98
      %p100 = scmp.ne.s32.totalorder %s92, %s94
      %p101 = scmp.eq.s32.totalorder %s21, 1
      %p102 = por %p100, %p101
      %p103 = scmp.ne.s32.totalorder %s94, %s95
      %p104 = scmp.eq.s32.totalorder %s21, 0
      %p105 = por %p103, %p104
      %p106 = scmp.ne.s32.totalorder %s94, %s95
      %p107 = scmp.eq.s32.totalorder %s22, 1
      %p108 = por %p106, %p107
      %p110 = scmp.ne.s32.totalorder %s95, %s109
      %p111 = scmp.eq.s32.totalorder %s22, 0
      %p112 = por %p110, %p111
      %s113 = ssub.s32 %s16, %s23
      %p114 = scmp.eq.s32.totalorder %s113, 0
      %s116 = sadd.s32 %s115, 1
      %s117 = scalar_select %p114, %s115, %s116
      %p120 = pneg %p114
      %p121 = scmp.eq.s32.totalorder %s16, 1
      %p122 = por %p120, %p121
      %p123 = scmp.ne.s32.totalorder %s115, %s118
      %p124 = scmp.eq.s32.totalorder %s16, 0
      %p125 = por %p123, %p124
      %p126 = scmp.ne.s32.totalorder %s115, %s118
      %p127 = scmp.eq.s32.totalorder %s21, 1
      %p128 = por %p126, %p127
      %p129 = scmp.ne.s32.totalorder %s118, %s119
      %p130 = scmp.eq.s32.totalorder %s21, 0
      %p131 = por %p129, %p130
      %p132 = scmp.ne.s32.totalorder %s118, %s119
      %p133 = scmp.eq.s32.totalorder %s22, 1
      %p134 = por %p132, %p133
      %p136 = scmp.ne.s32.totalorder %s119, %s135
      %p137 = scmp.eq.s32.totalorder %s22, 0
      %p138 = por %p136, %p137
      %p139 = scmp.le.s32.totalorder 1, %s16
      %p140 = scmp.lt.s32.totalorder %s16, 3
      %p141 = pnand %p139, %p140
      %p142 = pneg %p141
      // Predicated region
      $region9: #{tpu_custom_call.1} parent=5 // pred_check
        _
      $region10: #{tpu_custom_call.1} parent=5 // pred_check_branch
        %144 = sbr.rel (%p141) target = $region12
      $region11: #{tpu_custom_call.1} parent=5 // pred_region
        %s145 = ssub.s32 %s16, 1
        // Predicated region
        $region13: #{tpu_custom_call.1} parent=11 // pred_check
          %p146 = pneg %p63
        $region14: #{tpu_custom_call.1} parent=11 // pred_check_branch
          %148 = sbr.rel (%p146) target = $region16
        $region15: #{tpu_custom_call.1} parent=11 // pred_region
          _
        $region16: #{tpu_custom_call.1} parent=11 // pred_fallthru
          _
        // Predicated region
        $region17: #{tpu_custom_call.1} parent=11 // pred_check
          %p149 = pneg %p84
        $region18: #{tpu_custom_call.1} parent=11 // pred_check_branch
          %151 = sbr.rel (%p149) target = $region20
        $region19: #{tpu_custom_call.1} parent=11 // pred_region
          _
        $region20: #{tpu_custom_call.1} parent=11 // pred_fallthru
          _
        // Predicated region
        $region21: #{tpu_custom_call.1} parent=11 // pred_check
          %p152 = pneg %p105
        $region22: #{tpu_custom_call.1} parent=11 // pred_check_branch
          %154 = sbr.rel (%p152) target = $region24
        $region23: #{tpu_custom_call.1} parent=11 // pred_region
          _
        $region24: #{tpu_custom_call.1} parent=11 // pred_fallthru
          _
      $region12: #{tpu_custom_call.1} parent=5 // pred_fallthru
        _
      %p155 = scmp.lt.s32.totalorder %s16, 2
      // Predicated region
      $region25: #{tpu_custom_call.1} parent=5 // pred_check
        %p156 = pneg %p155
      $region26: #{tpu_custom_call.1} parent=5 // pred_check_branch
        %158 = sbr.rel (%p156) target = $region28
      $region27: #{tpu_custom_call.1} parent=5 // pred_region
        // Predicated region
        $region29: #{tpu_custom_call.1} parent=27 // pred_check
          %p159 = pneg %p36
        $region30: #{tpu_custom_call.1} parent=27 // pred_check_branch
          %161 = sbr.rel (%p159) target = $region32
        $region31: #{tpu_custom_call.1} parent=27 // pred_region
          %s162 = sand.u32 %s26, 1
          %s163 = scalar_lea.sflag [#allocation3], %s162
          %s164 = sand.u32 %s26, 1
          %s165 = smul.addr %s164, 64
          %s166 = scalar_lea.vmem [#allocation2], %s165
          %s167 = smul.u32 2, %s16
          %s169 = ssub.s32 1024, 1024
          %170 = vsyncadd %s163, %s169
          %s171 = smul.addr %s167, 4
          %s172 = smul.addr %s171, 128
          %s173 = scalar_lea.hbm %s0, %s172
          %s174 = sshll.u32 %s166, 4
          %s175 = int_to_ptr.vmem [resolvable:$true] %s174
          %180 = dma.hbm_to_vmem [thread:$0]  %s173, 1024, %s175, %s163, 128, 128, 8
        $region32: #{tpu_custom_call.1} parent=27 // pred_fallthru
          _
      $region28: #{tpu_custom_call.1} parent=5 // pred_fallthru
        _
      %p181 = scmp.le.s32.totalorder 1, %s16
      %p182 = scmp.lt.s32.totalorder %s16, 3
      %p183 = pnand %p181, %p182
      %p184 = pneg %p183
      // Predicated region
      $region33: #{tpu_custom_call.1} parent=5 // pred_check
        _
      $region34: #{tpu_custom_call.1} parent=5 // pred_check_branch
        %186 = sbr.rel (%p183) target = $region36
      $region35: #{tpu_custom_call.1} parent=5 // pred_region
        %s187 = ssub.s32 %s16, 1
        %s188 = sand.u32 %s29, 1
        %s189 = scalar_lea.sflag [#allocation3], %s188
        %s190 = sand.u32 %s29, 1
        %s191 = smul.addr %s190, 64
        %s192 = scalar_lea.vmem [#allocation2], %s191
        // Predicated region
        $region37: #{tpu_custom_call.1} parent=35 // pred_check
          %p193 = pneg %p42
        $region38: #{tpu_custom_call.1} parent=35 // pred_check_branch
          %195 = sbr.rel (%p193) target = $region40
        $region39: #{tpu_custom_call.1} parent=35 // pred_region
          %196 = dma.done %s189, 1024
        $region40: #{tpu_custom_call.1} parent=35 // pred_fallthru
          _
        %s197 = sand.u32 %s29, 1
        %s198 = scalar_lea.sflag [#allocation3], %s197
        %s199 = sand.u32 %s29, 1
        %s200 = smul.addr %s199, 64
        %s201 = scalar_lea.vmem [#allocation2], %s200
        %p202 = pneg %p42
        %p203 = pneg %p39
        %p204 = pneg %p63
        %p205 = pneg %p60
        %p206 = pneg %p84
        %p207 = pneg %p81
        %p208 = pneg %p105
        %p209 = pneg %p102
        %p210 = pneg %p131
        %p211 = pneg %p128
        %s212 = sand.u32 %s118, 1
        %s213 = scalar_lea.sflag [#allocation4], %s212
        %s214 = sand.u32 %s118, 1
        %s215 = smul.addr %s214, 64
        %s216 = scalar_lea.vmem [#allocation5], %s215
        %s217 = smul.u32 2, %s21
        %s218 = smul.u32 2, %s21
        %v220 = vld [vmem:[%s1] sm:$0xf]
        %v221 = vld [vmem:[%s1 + $0x4] sm:$0xf]
        %v222 = vld [vmem:[%s1 + $0x8] sm:$0xf]
        %v223 = vld [vmem:[%s1 + $0xc] sm:$0xf]
        %v224 = vld [vmem:[%s1 + $0x10] sm:$0xf]
        %v225 = vld [vmem:[%s1 + $0x14] sm:$0xf]
        %v226 = vld [vmem:[%s1 + $0x18] sm:$0xf]
        %v227 = vld [vmem:[%s1 + $0x1c] sm:$0xf]
        %v228 = vld [vmem:[%s1 + $0x20] sm:$0xf]
        %v229 = vld [vmem:[%s1 + $0x24] sm:$0xf]
        %v230 = vld [vmem:[%s1 + $0x28] sm:$0xf]
        %v231 = vld [vmem:[%s1 + $0x2c] sm:$0xf]
        %v232 = vld [vmem:[%s1 + $0x30] sm:$0xf]
        %v233 = vld [vmem:[%s1 + $0x34] sm:$0xf]
        %v234 = vld [vmem:[%s1 + $0x38] sm:$0xf]
        %v235 = vld [vmem:[%s1 + $0x3c] sm:$0xf]
        %v236 = vld [vmem:[%s3] sm:$0xff]
        %v237 = vld [vmem:[%s3 + $0x8] sm:$0xff]
        %v238 = vld [vmem:[%s3 + $0x10] sm:$0xff]
        %v239 = vld [vmem:[%s3 + $0x18] sm:$0xff]
        %241 = vset.pattern.permute.xlu0 1
        %242 = vperm.xlu0 %241, %v236
        %v243 = vpop.permute.xlu0 %242
        %246 = vset.pattern.permute.xlu0 1
        %247 = vperm.xlu0 %246, %v237
        %v248 = vpop.permute.xlu0 %247
        %251 = vset.pattern.permute.xlu0 1
        %252 = vperm.xlu0 %251, %v238
        %v253 = vpop.permute.xlu0 %252
        %256 = vset.pattern.permute.xlu0 1
        %257 = vperm.xlu0 %256, %v239
        %v258 = vpop.permute.xlu0 %257
        %v260 = vld [vmem:[%s192] sm:$0xff]
        %v261 = vld [vmem:[%s192 + $0x8] sm:$0xff]
        %v262 = vld [vmem:[%s192 + $0x10] sm:$0xff]
        %v263 = vld [vmem:[%s192 + $0x18] sm:$0xff]
        %v264 = vpack.c.bf16 %v261, %v260
        %v265 = vpack.c.bf16 %v263, %v262
        %v266 = vmul.f32 %v260, %v260
        %v267 = vmul.f32 %v261, %v261
        %v268 = vmul.f32 %v262, %v262
        %v269 = vmul.f32 %v263, %v263
        %v270 = vadd.f32 %v266, %v267
        %v271 = vadd.f32 %v270, %v268
        %v272 = vadd.f32 %v271, %v269
        %v273 = vrot.slane %v272, 4
        %v274 = vadd.f32 %v272, %v273
        %v275 = vrot.slane %v274, 2
        %v276 = vadd.f32 %v274, %v275
        %v277 = vrot.slane %v276, 1
        %v278 = vadd.f32 %v276, %v277
        %279 = vxpose.xlu0.b32.start [1/16] %v260, 128
        %280 = vxpose.xlu0.b32.cont [2/16] %v261, 128
        %281 = vxpose.xlu0.b32.cont [3/16] %v262, 128
        %282 = vxpose.xlu0.b32.cont [4/16] %v263, 128
        %283 = vxpose.xlu0.b32.cont [5/16] 0.0, 128
        %284 = vxpose.xlu0.b32.cont [6/16] 0.0, 128
        %285 = vxpose.xlu0.b32.cont [7/16] 0.0, 128
        %286 = vxpose.xlu0.b32.cont [8/16] 0.0, 128
        %287 = vxpose.xlu0.b32.cont [9/16] 0.0, 128
        %288 = vxpose.xlu0.b32.cont [10/16] 0.0, 128
        %289 = vxpose.xlu0.b32.cont [11/16] 0.0, 128
        %290 = vxpose.xlu0.b32.cont [12/16] 0.0, 128
        %291 = vxpose.xlu0.b32.cont [13/16] 0.0, 128
        %292 = vxpose.xlu0.b32.cont [14/16] 0.0, 128
        %293 = vxpose.xlu0.b32.cont [15/16] 0.0, 128
        %294 = vxpose.xlu0.b32.end [16/16] 0.0, 128
        %v295 = vpop.trf.xlu0
        %v296 = vpop.trf.xlu0
        %v297 = vpop.trf.xlu0
        %v298 = vpop.trf.xlu0
        %v299 = vpop.trf.xlu0
        %v300 = vpop.trf.xlu0
        %v301 = vpop.trf.xlu0
        %v302 = vpop.trf.xlu0
        %v303 = vpop.trf.xlu0
        %v304 = vpop.trf.xlu0
        %v305 = vpop.trf.xlu0
        %v306 = vpop.trf.xlu0
        %v307 = vpop.trf.xlu0
        %v308 = vpop.trf.xlu0
        %v309 = vpop.trf.xlu0
        %v310 = vpop.trf.xlu0
        %vm311 = vcmask 261120
        %v313 = vsel %vm311, %v295, 0
        %v316 = vsel %vm311, %v296, 0
        %v319 = vsel %vm311, %v297, 0
        %v322 = vsel %vm311, %v298, 0
        %v325 = vsel %vm311, %v299, 0
        %v328 = vsel %vm311, %v300, 0
        %v331 = vsel %vm311, %v301, 0
        %v334 = vsel %vm311, %v302, 0
        %v337 = vsel %vm311, %v303, 0
        %v340 = vsel %vm311, %v304, 0
        %v343 = vsel %vm311, %v305, 0
        %v346 = vsel %vm311, %v306, 0
        %v349 = vsel %vm311, %v307, 0
        %v352 = vsel %vm311, %v308, 0
        %v355 = vsel %vm311, %v309, 0
        %v358 = vsel %vm311, %v310, 0
        %360 = vmatprep.subr.mxu0 0.0
        %361 = vmatpush1.msra.mxu0 %v260
        %362 = vmatprep.subr.mxu0 0.0
        %363 = vmatpush1.msra.mxu0 %v261
        %364 = vmatprep.subr.mxu0 0.0
        %365 = vmatpush1.msra.mxu0 %v262
        %366 = vmatprep.subr.mxu0 0.0
        %367 = vmatpush1.msra.mxu0 %v263
        %368 = vmatprep.subr.mxu0 0.0
        %369 = vmatpush1.msra.mxu0 0.0
        %370 = vmatprep.subr.mxu0 0.0
        %371 = vmatpush1.msra.mxu0 0.0
        %372 = vmatprep.subr.mxu0 0.0
        %373 = vmatpush1.msra.mxu0 0.0
        %374 = vmatprep.subr.mxu0 0.0
        %375 = vmatpush1.msra.mxu0 0.0
        %376 = vmatprep.subr.mxu0 0.0
        %377 = vmatpush1.msra.mxu0 0.0
        %378 = vmatprep.subr.mxu0 0.0
        %379 = vmatpush1.msra.mxu0 0.0
        %380 = vmatprep.subr.mxu0 0.0
        %381 = vmatpush1.msra.mxu0 0.0
        %382 = vmatprep.subr.mxu0 0.0
        %383 = vmatpush1.msra.mxu0 0.0
        %384 = vmatprep.subr.mxu0 0.0
        %385 = vmatpush1.msra.mxu0 0.0
        %386 = vmatprep.subr.mxu0 0.0
        %387 = vmatpush1.msra.mxu0 0.0
        %388 = vmatprep.subr.mxu0 0.0
        %389 = vmatpush1.msra.mxu0 0.0
        %390 = vmatprep.subr.mxu0 0.0
        %391 = vmatpush1.msra.mxu0 0.0
        %392 = vmatprep.subr.mxu0 0.0
        %393 = vmatpush1.msra.mxu0 0.0
        %394 = vmatprep.subr.mxu0 0.0
        %395 = vmatpush1.msra.mxu0 0.0
        %396 = vmatprep.subr.mxu0 0.0
        %397 = vmatpush1.msra.mxu0 0.0
        %398 = vmatprep.subr.mxu0 0.0
        %399 = vmatpush1.msra.mxu0 0.0
        %400 = vmatprep.subr.mxu0 0.0
        %401 = vmatpush1.msra.mxu0 0.0
        %402 = vmatprep.subr.mxu0 0.0
        %403 = vmatpush1.msra.mxu0 0.0
        %404 = vmatprep.subr.mxu0 0.0
        %405 = vmatpush1.msra.mxu0 0.0
        %406 = vmatprep.subr.mxu0 0.0
        %407 = vmatpush1.msra.mxu0 0.0
        %408 = vmatprep.subr.mxu0 0.0
        %409 = vmatpush1.msra.mxu0 0.0
        %410 = vmatprep.subr.mxu0 0.0
        %411 = vmatpush1.msra.mxu0 0.0
        %412 = vmatprep.subr.mxu0 0.0
        %413 = vmatpush1.msra.mxu0 0.0
        %414 = vmatprep.subr.mxu0 0.0
        %415 = vmatpush1.msra.mxu0 0.0
        %416 = vmatprep.subr.mxu0 0.0
        %417 = vmatpush1.msra.mxu0 0.0
        %418 = vmatprep.subr.mxu0 0.0
        %419 = vmatpush1.msra.mxu0 0.0
        %420 = vmatprep.subr.mxu0 0.0
        %421 = vmatpush1.msra.mxu0 0.0
        %422 = vmatprep.subr.mxu0 0.0
        %423 = vmatpush1.msra.mxu0 0.0
        %424 = vmatprep.mubr.f32.mxu0 0.0
        %425 = vmatmul.mubr.f32.gmra.mrb[0].mxu0 %v313
        %v426 = vpop.f32.mrb[0].mxu0
        %v427 = vadd.f32 0.0, %v426
        %v428 = vpop.f32.mrb[0].mxu0
        %429 = vmatprep.mubr.f32.mxu0 0.0
        %430 = vmatmul.mubr.f32.gmra.mrb[0].mxu0 %v316
        %v431 = vpop.f32.mrb[0].mxu0
        %v432 = vadd.f32 0.0, %v431
        %v433 = vpop.f32.mrb[0].mxu0
        %434 = vmatprep.mubr.f32.mxu0 0.0
        %435 = vmatmul.mubr.f32.gmra.mrb[0].mxu0 %v319
        %v436 = vpop.f32.mrb[0].mxu0
        %v437 = vadd.f32 0.0, %v436
        %v438 = vpop.f32.mrb[0].mxu0
        %439 = vmatprep.mubr.f32.mxu0 0.0
        %440 = vmatmul.mubr.f32.gmra.mrb[0].mxu0 %v322
        %v441 = vpop.f32.mrb[0].mxu0
        %v442 = vadd.f32 0.0, %v441
        %v443 = vpop.f32.mrb[0].mxu0
        %444 = vmatprep.mubr.f32.mxu0 0.0
        %445 = vmatmul.mubr.f32.gmra.mrb[0].mxu0 %v325
        %v446 = vpop.f32.mrb[0].mxu0
        %v447 = vadd.f32 0.0, %v446
        %v448 = vpop.f32.mrb[0].mxu0
        %449 = vmatprep.mubr.f32.mxu0 0.0
        %450 = vmatmul.mubr.f32.gmra.mrb[0].mxu0 %v328
        %v451 = vpop.f32.mrb[0].mxu0
        %v452 = vadd.f32 0.0, %v451
        %v453 = vpop.f32.mrb[0].mxu0
        %454 = vmatprep.mubr.f32.mxu0 0.0
        %455 = vmatmul.mubr.f32.gmra.mrb[0].mxu0 %v331
        %v456 = vpop.f32.mrb[0].mxu0
        %v457 = vadd.f32 0.0, %v456
        %v458 = vpop.f32.mrb[0].mxu0
        %459 = vmatprep.mubr.f32.mxu0 0.0
        %460 = vmatmul.mubr.f32.gmra.mrb[0].mxu0 %v334
        %v461 = vpop.f32.mrb[0].mxu0
        %v462 = vadd.f32 0.0, %v461
        %v463 = vpop.f32.mrb[0].mxu0
        %464 = vmatprep.mubr.f32.mxu0 0.0
        %465 = vmatmul.mubr.f32.gmra.mrb[0].mxu0 %v337
        %v466 = vpop.f32.mrb[0].mxu0
        %v467 = vadd.f32 0.0, %v466
        %v468 = vpop.f32.mrb[0].mxu0
        %469 = vmatprep.mubr.f32.mxu0 0.0
        %470 = vmatmul.mubr.f32.gmra.mrb[0].mxu0 %v340
        %v471 = vpop.f32.mrb[0].mxu0
        %v472 = vadd.f32 0.0, %v471
        %v473 = vpop.f32.mrb[0].mxu0
        %474 = vmatprep.mubr.f32.mxu0 0.0
        %475 = vmatmul.mubr.f32.gmra.mrb[0].mxu0 %v343
        %v476 = vpop.f32.mrb[0].mxu0
        %v477 = vadd.f32 0.0, %v476
        %v478 = vpop.f32.mrb[0].mxu0
        %479 = vmatprep.mubr.f32.mxu0 0.0
        %480 = vmatmul.mubr.f32.gmra.mrb[0].mxu0 %v346
        %v481 = vpop.f32.mrb[0].mxu0
        %v482 = vadd.f32 0.0, %v481
        %v483 = vpop.f32.mrb[0].mxu0
        %484 = vmatprep.mubr.f32.mxu0 0.0
        %485 = vmatmul.mubr.f32.gmra.mrb[0].mxu0 %v349
        %v486 = vpop.f32.mrb[0].mxu0
        %v487 = vadd.f32 0.0, %v486
        %v488 = vpop.f32.mrb[0].mxu0
        %489 = vmatprep.mubr.f32.mxu0 0.0
        %490 = vmatmul.mubr.f32.gmra.mrb[0].mxu0 %v352
        %v491 = vpop.f32.mrb[0].mxu0
        %v492 = vadd.f32 0.0, %v491
        %v493 = vpop.f32.mrb[0].mxu0
        %494 = vmatprep.mubr.f32.mxu0 0.0
        %495 = vmatmul.mubr.f32.gmra.mrb[0].mxu0 %v355
        %v496 = vpop.f32.mrb[0].mxu0
        %v497 = vadd.f32 0.0, %v496
        %v498 = vpop.f32.mrb[0].mxu0
        %499 = vmatprep.mubr.f32.mxu0 0.0
        %500 = vmatmul.mubr.f32.gmra.mrb[0].mxu0 %v358
        %v501 = vpop.f32.mrb[0].mxu0
        %v502 = vadd.f32 0.0, %v501
        %v503 = vpop.f32.mrb[0].mxu0
        %504 = vdwg.mxu0
        %v505 = vmul.f32 %v427, 2.0
        %v506 = vmul.f32 %v432, 2.0
        %v507 = vmul.f32 %v437, 2.0
        %v508 = vmul.f32 %v442, 2.0
        %v509 = vmul.f32 %v447, 2.0
        %v510 = vmul.f32 %v452, 2.0
        %v511 = vmul.f32 %v457, 2.0
        %v512 = vmul.f32 %v462, 2.0
        %v513 = vmul.f32 %v467, 2.0
        %v514 = vmul.f32 %v472, 2.0
        %v515 = vmul.f32 %v477, 2.0
        %v516 = vmul.f32 %v482, 2.0
        %v517 = vmul.f32 %v487, 2.0
        %v518 = vmul.f32 %v492, 2.0
        %v519 = vmul.f32 %v497, 2.0
        %v520 = vmul.f32 %v502, 2.0
        %v521 = vsub.f32 %v505, %v278
        %v522 = vsub.f32 %v506, %v278
        %v523 = vsub.f32 %v507, %v278
        %v524 = vsub.f32 %v508, %v278
        %v525 = vsub.f32 %v509, %v278
        %v526 = vsub.f32 %v510, %v278
        %v527 = vsub.f32 %v511, %v278
        %v528 = vsub.f32 %v512, %v278
        %v529 = vsub.f32 %v513, %v278
        %v530 = vsub.f32 %v514, %v278
        %v531 = vsub.f32 %v515, %v278
        %v532 = vsub.f32 %v516, %v278
        %v533 = vsub.f32 %v517, %v278
        %v534 = vsub.f32 %v518, %v278
        %v535 = vsub.f32 %v519, %v278
        %v536 = vsub.f32 %v520, %v278
        %537 = vxpose.xlu0.b32.start [1/16] %v278, 128
        %538 = vxpose.xlu0.b32.cont [2/16] 0.0, 128
        %539 = vxpose.xlu0.b32.cont [3/16] 0.0, 128
        %540 = vxpose.xlu0.b32.cont [4/16] 0.0, 128
        %541 = vxpose.xlu0.b32.cont [5/16] 0.0, 128
        %542 = vxpose.xlu0.b32.cont [6/16] 0.0, 128
        %543 = vxpose.xlu0.b32.cont [7/16] 0.0, 128
        %544 = vxpose.xlu0.b32.cont [8/16] 0.0, 128
        %545 = vxpose.xlu0.b32.cont [9/16] 0.0, 128
        %546 = vxpose.xlu0.b32.cont [10/16] 0.0, 128
        %547 = vxpose.xlu0.b32.cont [11/16] 0.0, 128
        %548 = vxpose.xlu0.b32.cont [12/16] 0.0, 128
        %549 = vxpose.xlu0.b32.cont [13/16] 0.0, 128
        %550 = vxpose.xlu0.b32.cont [14/16] 0.0, 128
        %551 = vxpose.xlu0.b32.cont [15/16] 0.0, 128
        %552 = vxpose.xlu0.b32.end [16/16] 0.0, 128
        %v553 = vpop.trf.xlu0
        %v554 = vpop.trf.xlu0
        %v555 = vpop.trf.xlu0
        %v556 = vpop.trf.xlu0
        %v557 = vpop.trf.xlu0
        %v558 = vpop.trf.xlu0
        %v559 = vpop.trf.xlu0
        %v560 = vpop.trf.xlu0
        %v561 = vpop.trf.xlu0
        %v562 = vpop.trf.xlu0
        %v563 = vpop.trf.xlu0
        %v564 = vpop.trf.xlu0
        %v565 = vpop.trf.xlu0
        %v566 = vpop.trf.xlu0
        %v567 = vpop.trf.xlu0
        %v568 = vpop.trf.xlu0
        %570 = vset.pattern.permute.xlu0 0
        %571 = vperm.xlu0 %570, %v553
        %v572 = vpop.permute.xlu0 %571
        %575 = vset.pattern.permute.xlu0 0
        %576 = vperm.xlu0 %575, %v554
        %v577 = vpop.permute.xlu0 %576
        %580 = vset.pattern.permute.xlu0 0
        %581 = vperm.xlu0 %580, %v555
        %v582 = vpop.permute.xlu0 %581
        %585 = vset.pattern.permute.xlu0 0
        %586 = vperm.xlu0 %585, %v556
        %v587 = vpop.permute.xlu0 %586
        %590 = vset.pattern.permute.xlu0 0
        %591 = vperm.xlu0 %590, %v557
        %v592 = vpop.permute.xlu0 %591
        %595 = vset.pattern.permute.xlu0 0
        %596 = vperm.xlu0 %595, %v558
        %v597 = vpop.permute.xlu0 %596
        %600 = vset.pattern.permute.xlu0 0
        %601 = vperm.xlu0 %600, %v559
        %v602 = vpop.permute.xlu0 %601
        %605 = vset.pattern.permute.xlu0 0
        %606 = vperm.xlu0 %605, %v560
        %v607 = vpop.permute.xlu0 %606
        %610 = vset.pattern.permute.xlu0 0
        %611 = vperm.xlu0 %610, %v561
        %v612 = vpop.permute.xlu0 %611
        %615 = vset.pattern.permute.xlu0 0
        %616 = vperm.xlu0 %615, %v562
        %v617 = vpop.permute.xlu0 %616
        %620 = vset.pattern.permute.xlu0 0
        %621 = vperm.xlu0 %620, %v563
        %v622 = vpop.permute.xlu0 %621
        %625 = vset.pattern.permute.xlu0 0
        %626 = vperm.xlu0 %625, %v564
        %v627 = vpop.permute.xlu0 %626
        %630 = vset.pattern.permute.xlu0 0
        %631 = vperm.xlu0 %630, %v565
        %v632 = vpop.permute.xlu0 %631
        %635 = vset.pattern.permute.xlu0 0
        %636 = vperm.xlu0 %635, %v566
        %v637 = vpop.permute.xlu0 %636
        %640 = vset.pattern.permute.xlu0 0
        %641 = vperm.xlu0 %640, %v567
        %v642 = vpop.permute.xlu0 %641
        %645 = vset.pattern.permute.xlu0 0
        %646 = vperm.xlu0 %645, %v568
        %v647 = vpop.permute.xlu0 %646
        %v649 = vsub.f32 %v521, %v572
        %v650 = vsub.f32 %v522, %v577
        %v651 = vsub.f32 %v523, %v582
        %v652 = vsub.f32 %v524, %v587
        %v653 = vsub.f32 %v525, %v592
        %v654 = vsub.f32 %v526, %v597
        %v655 = vsub.f32 %v527, %v602
        %v656 = vsub.f32 %v528, %v607
        %v657 = vsub.f32 %v529, %v612
        %v658 = vsub.f32 %v530, %v617
        %v659 = vsub.f32 %v531, %v622
        %v660 = vsub.f32 %v532, %v627
        %v661 = vsub.f32 %v533, %v632
        %v662 = vsub.f32 %v534, %v637
        %v663 = vsub.f32 %v535, %v642
        %v664 = vsub.f32 %v536, %v647
        %v681 = vunpack.c.l.b16 %v220
        %v682 = vunpack.c.l.b16 %v221
        %v683 = vunpack.c.l.b16 %v222
        %v684 = vunpack.c.l.b16 %v223
        %v685 = vunpack.c.l.b16 %v224
        %v686 = vunpack.c.l.b16 %v225
        %v687 = vunpack.c.l.b16 %v226
        %v688 = vunpack.c.l.b16 %v227
        %v689 = vunpack.c.l.b16 %v228
        %v690 = vunpack.c.l.b16 %v229
        %v691 = vunpack.c.l.b16 %v230
        %v692 = vunpack.c.l.b16 %v231
        %v693 = vunpack.c.l.b16 %v232
        %v694 = vunpack.c.l.b16 %v233
        %v695 = vunpack.c.l.b16 %v234
        %v696 = vunpack.c.l.b16 %v235
        %v697 = vpack.c.b16 %v682, %v681
        %v698 = vpack.c.b16 %v684, %v683
        %v699 = vpack.c.b16 %v686, %v685
        %v700 = vpack.c.b16 %v688, %v687
        %v701 = vpack.c.b16 %v690, %v689
        %v702 = vpack.c.b16 %v692, %v691
        %v703 = vpack.c.b16 %v694, %v693
        %v704 = vpack.c.b16 %v696, %v695
        %v706 = vsel %vm311, %v697, 0
        %v709 = vsel %vm311, %v698, 0
        %v712 = vsel %vm311, %v699, 0
        %v715 = vsel %vm311, %v700, 0
        %v718 = vsel %vm311, %v701, 0
        %v721 = vsel %vm311, %v702, 0
        %v724 = vsel %vm311, %v703, 0
        %v727 = vsel %vm311, %v704, 0
        %729 = vmatprep.subr.bf16.mxu0 0
        %730 = vmatpush1.bf16.msra.mxu0 %v264
        %731 = vmatprep.subr.bf16.mxu0 0
        %732 = vmatpush1.bf16.msra.mxu0 %v265
        %733 = vmatprep.subr.bf16.mxu0 0
        %734 = vmatpush1.bf16.msra.mxu0 0
        %735 = vmatprep.subr.bf16.mxu0 0
        %736 = vmatpush1.bf16.msra.mxu0 0
        %737 = vmatprep.subr.bf16.mxu0 0
        %738 = vmatpush1.bf16.msra.mxu0 0
        %739 = vmatprep.subr.bf16.mxu0 0
        %740 = vmatpush1.bf16.msra.mxu0 0
        %741 = vmatprep.subr.bf16.mxu0 0
        %742 = vmatpush1.bf16.msra.mxu0 0
        %743 = vmatprep.subr.bf16.mxu0 0
        %744 = vmatpush1.bf16.msra.mxu0 0
        %745 = vmatprep.subr.bf16.mxu0 0
        %746 = vmatpush1.bf16.msra.mxu0 0
        %747 = vmatprep.subr.bf16.mxu0 0
        %748 = vmatpush1.bf16.msra.mxu0 0
        %749 = vmatprep.subr.bf16.mxu0 0
        %750 = vmatpush1.bf16.msra.mxu0 0
        %751 = vmatprep.subr.bf16.mxu0 0
        %752 = vmatpush1.bf16.msra.mxu0 0
        %753 = vmatprep.subr.bf16.mxu0 0
        %754 = vmatpush1.bf16.msra.mxu0 0
        %755 = vmatprep.subr.bf16.mxu0 0
        %756 = vmatpush1.bf16.msra.mxu0 0
        %757 = vmatprep.subr.bf16.mxu0 0
        %758 = vmatpush1.bf16.msra.mxu0 0
        %759 = vmatprep.subr.bf16.mxu0 0
        %760 = vmatpush1.bf16.msra.mxu0 0
        %761 = vmatprep.mubr.bf16.mxu0 0
        %762 = vmatmul.mubr.bf16.gmra.mrb[0].mxu0 %v706
        %v763 = vpop.f32.mrb[0].mxu0
        %v764 = vadd.f32 0.0, %v763
        %v765 = vpop.f32.mrb[0].mxu0
        %v766 = vpop.f32.mrb[0].mxu0
        %v767 = vadd.f32 0.0, %v766
        %v768 = vpop.f32.mrb[0].mxu0
        %769 = vmatprep.mubr.bf16.mxu0 0
        %770 = vmatmul.mubr.bf16.gmra.mrb[0].mxu0 %v709
        %v771 = vpop.f32.mrb[0].mxu0
        %v772 = vadd.f32 0.0, %v771
        %v773 = vpop.f32.mrb[0].mxu0
        %v774 = vpop.f32.mrb[0].mxu0
        %v775 = vadd.f32 0.0, %v774
        %v776 = vpop.f32.mrb[0].mxu0
        %777 = vmatprep.mubr.bf16.mxu0 0
        %778 = vmatmul.mubr.bf16.gmra.mrb[0].mxu0 %v712
        %v779 = vpop.f32.mrb[0].mxu0
        %v780 = vadd.f32 0.0, %v779
        %v781 = vpop.f32.mrb[0].mxu0
        %v782 = vpop.f32.mrb[0].mxu0
        %v783 = vadd.f32 0.0, %v782
        %v784 = vpop.f32.mrb[0].mxu0
        %785 = vmatprep.mubr.bf16.mxu0 0
        %786 = vmatmul.mubr.bf16.gmra.mrb[0].mxu0 %v715
        %v787 = vpop.f32.mrb[0].mxu0
        %v788 = vadd.f32 0.0, %v787
        %v789 = vpop.f32.mrb[0].mxu0
        %v790 = vpop.f32.mrb[0].mxu0
        %v791 = vadd.f32 0.0, %v790
        %v792 = vpop.f32.mrb[0].mxu0
        %793 = vmatprep.mubr.bf16.mxu0 0
        %794 = vmatmul.mubr.bf16.gmra.mrb[0].mxu0 %v718
        %v795 = vpop.f32.mrb[0].mxu0
        %v796 = vadd.f32 0.0, %v795
        %v797 = vpop.f32.mrb[0].mxu0
        %v798 = vpop.f32.mrb[0].mxu0
        %v799 = vadd.f32 0.0, %v798
        %v800 = vpop.f32.mrb[0].mxu0
        %801 = vmatprep.mubr.bf16.mxu0 0
        %802 = vmatmul.mubr.bf16.gmra.mrb[0].mxu0 %v721
        %v803 = vpop.f32.mrb[0].mxu0
        %v804 = vadd.f32 0.0, %v803
        %v805 = vpop.f32.mrb[0].mxu0
        %v806 = vpop.f32.mrb[0].mxu0
        %v807 = vadd.f32 0.0, %v806
        %v808 = vpop.f32.mrb[0].mxu0
        %809 = vmatprep.mubr.bf16.mxu0 0
        %810 = vmatmul.mubr.bf16.gmra.mrb[0].mxu0 %v724
        %v811 = vpop.f32.mrb[0].mxu0
        %v812 = vadd.f32 0.0, %v811
        %v813 = vpop.f32.mrb[0].mxu0
        %v814 = vpop.f32.mrb[0].mxu0
        %v815 = vadd.f32 0.0, %v814
        %v816 = vpop.f32.mrb[0].mxu0
        %817 = vmatprep.mubr.bf16.mxu0 0
        %818 = vmatmul.mubr.bf16.gmra.mrb[0].mxu0 %v727
        %v819 = vpop.f32.mrb[0].mxu0
        %v820 = vadd.f32 0.0, %v819
        %v821 = vpop.f32.mrb[0].mxu0
        %v822 = vpop.f32.mrb[0].mxu0
        %v823 = vadd.f32 0.0, %v822
        %v824 = vpop.f32.mrb[0].mxu0
        %825 = vdwg.mxu0
        %826 = vset.pattern.permute.xlu0 0
        %827 = vperm.xlu0 %826, %v236
        %v828 = vpop.permute.xlu0 %827
        %830 = vset.pattern.permute.xlu0 0
        %831 = vperm.xlu0 %830, %v237
        %v832 = vpop.permute.xlu0 %831
        %834 = vset.pattern.permute.xlu0 0
        %835 = vperm.xlu0 %834, %v238
        %v836 = vpop.permute.xlu0 %835
        %838 = vset.pattern.permute.xlu0 0
        %839 = vperm.xlu0 %838, %v239
        %v840 = vpop.permute.xlu0 %839
        %v842 = vadd.f32 %v764, %v828
        %v843 = vadd.f32 %v767, %v832
        %v844 = vadd.f32 %v772, %v836
        %v845 = vadd.f32 %v775, %v840
        %v846 = vpack.c.bf16 %v783, %v780
        %v847 = vpack.c.bf16 %v791, %v788
        %v848 = vpack.c.bf16 %v799, %v796
        %v849 = vpack.c.bf16 %v807, %v804
        %v850 = vpack.c.bf16 %v815, %v812
        %v851 = vpack.c.bf16 %v823, %v820
        loop: start=0, step=1, limit=3
        $region41: #{tpu_custom_call.1} parent=35 // loop_pre_header
          _
        $region42: #{tpu_custom_call.1} parent=35 // loop_header
          %s853 = sphi 0, %s857
          %p854 = scmp.ge.s32.totalorder %s853, 3
          %v858 = vphi %v649, %v1134
          %v859 = vphi %v650, %v1135
          %v860 = vphi %v651, %v1136
          %v861 = vphi %v652, %v1137
          %v862 = vphi %v653, %v1138
          %v863 = vphi %v654, %v1139
          %v864 = vphi %v655, %v1140
          %v865 = vphi %v656, %v1141
          %v866 = vphi %v657, %v1142
          %v867 = vphi %v658, %v1143
          %v868 = vphi %v659, %v1144
          %v869 = vphi %v660, %v1145
          %v870 = vphi %v661, %v1146
          %v871 = vphi %v662, %v1147
          %v872 = vphi %v663, %v1148
          %v873 = vphi %v664, %v1149
          %v874 = vphi %v243, %v1370
          %v875 = vphi %v248, %v1371
          %v876 = vphi %v253, %v1372
          %v877 = vphi %v258, %v1373
        $region43: #{tpu_custom_call.1} parent=35 // loop_header_branch
          %856 = sbr.rel (%p854) target = $region47
        $region44: #{tpu_custom_call.1} parent=35 // loop_body
          %878 = vmax.xlane.f32.xlu0 %v858
          %v879 = vpop.xlane.xlu0 %878
          %880 = vmax.xlane.f32.xlu0 %v859
          %v881 = vpop.xlane.xlu0 %880
          %882 = vmax.xlane.f32.xlu0 %v860
          %v883 = vpop.xlane.xlu0 %882
          %884 = vmax.xlane.f32.xlu0 %v861
          %v885 = vpop.xlane.xlu0 %884
          %886 = vmax.xlane.f32.xlu0 %v862
          %v887 = vpop.xlane.xlu0 %886
          %888 = vmax.xlane.f32.xlu0 %v863
          %v889 = vpop.xlane.xlu0 %888
          %890 = vmax.xlane.f32.xlu0 %v864
          %v891 = vpop.xlane.xlu0 %890
          %892 = vmax.xlane.f32.xlu0 %v865
          %v893 = vpop.xlane.xlu0 %892
          %894 = vmax.xlane.f32.xlu0 %v866
          %v895 = vpop.xlane.xlu0 %894
          %896 = vmax.xlane.f32.xlu0 %v867
          %v897 = vpop.xlane.xlu0 %896
          %898 = vmax.xlane.f32.xlu0 %v868
          %v899 = vpop.xlane.xlu0 %898
          %900 = vmax.xlane.f32.xlu0 %v869
          %v901 = vpop.xlane.xlu0 %900
          %902 = vmax.xlane.f32.xlu0 %v870
          %v903 = vpop.xlane.xlu0 %902
          %904 = vmax.xlane.f32.xlu0 %v871
          %v905 = vpop.xlane.xlu0 %904
          %906 = vmax.xlane.f32.xlu0 %v872
          %v907 = vpop.xlane.xlu0 %906
          %908 = vmax.xlane.f32.xlu0 %v873
          %v909 = vpop.xlane.xlu0 %908
          %vm910 = vcmp.ge.f32.partialorder %v858, %v879
          %vm911 = vcmp.ge.f32.partialorder %v859, %v881
          %vm912 = vcmp.ge.f32.partialorder %v860, %v883
          %vm913 = vcmp.ge.f32.partialorder %v861, %v885
          %vm914 = vcmp.ge.f32.partialorder %v862, %v887
          %vm915 = vcmp.ge.f32.partialorder %v863, %v889
          %vm916 = vcmp.ge.f32.partialorder %v864, %v891
          %vm917 = vcmp.ge.f32.partialorder %v865, %v893
          %vm918 = vcmp.ge.f32.partialorder %v866, %v895
          %vm919 = vcmp.ge.f32.partialorder %v867, %v897
          %vm920 = vcmp.ge.f32.partialorder %v868, %v899
          %vm921 = vcmp.ge.f32.partialorder %v869, %v901
          %vm922 = vcmp.ge.f32.partialorder %v870, %v903
          %vm923 = vcmp.ge.f32.partialorder %v871, %v905
          %vm924 = vcmp.ge.f32.partialorder %v872, %v907
          %vm925 = vcmp.ge.f32.partialorder %v873, %v909
          %v926 = vsel %vm910, -1e+30, %v858
          %v927 = vsel %vm911, -1e+30, %v859
          %v928 = vsel %vm912, -1e+30, %v860
          %v929 = vsel %vm913, -1e+30, %v861
          %v930 = vsel %vm914, -1e+30, %v862
          %v931 = vsel %vm915, -1e+30, %v863
          %v932 = vsel %vm916, -1e+30, %v864
          %v933 = vsel %vm917, -1e+30, %v865
          %v934 = vsel %vm918, -1e+30, %v866
          %v935 = vsel %vm919, -1e+30, %v867
          %v936 = vsel %vm920, -1e+30, %v868
          %v937 = vsel %vm921, -1e+30, %v869
          %v938 = vsel %vm922, -1e+30, %v870
          %v939 = vsel %vm923, -1e+30, %v871
          %v940 = vsel %vm924, -1e+30, %v872
          %v941 = vsel %vm925, -1e+30, %v873
          %v942 = vsel %vm910, 1, 0
          %v943 = vsel %vm911, 1, 0
          %v944 = vsel %vm912, 1, 0
          %v945 = vsel %vm913, 1, 0
          %v946 = vsel %vm914, 1, 0
          %v947 = vsel %vm915, 1, 0
          %v948 = vsel %vm916, 1, 0
          %v949 = vsel %vm917, 1, 0
          %v950 = vsel %vm918, 1, 0
          %v951 = vsel %vm919, 1, 0
          %v952 = vsel %vm920, 1, 0
          %v953 = vsel %vm921, 1, 0
          %v954 = vsel %vm922, 1, 0
          %v955 = vsel %vm923, 1, 0
          %v956 = vsel %vm924, 1, 0
          %v957 = vsel %vm925, 1, 0
          %v958 = vcvt.s32.f32 %v942
          %v959 = vcvt.s32.f32 %v943
          %v960 = vcvt.s32.f32 %v944
          %v961 = vcvt.s32.f32 %v945
          %v962 = vcvt.s32.f32 %v946
          %v963 = vcvt.s32.f32 %v947
          %v964 = vcvt.s32.f32 %v948
          %v965 = vcvt.s32.f32 %v949
          %v966 = vcvt.s32.f32 %v950
          %v967 = vcvt.s32.f32 %v951
          %v968 = vcvt.s32.f32 %v952
          %v969 = vcvt.s32.f32 %v953
          %v970 = vcvt.s32.f32 %v954
          %v971 = vcvt.s32.f32 %v955
          %v972 = vcvt.s32.f32 %v956
          %v973 = vcvt.s32.f32 %v957
          %v974 = vpack.c.bf16 %v959, %v958
          %v975 = vpack.c.bf16 %v961, %v960
          %v976 = vpack.c.bf16 %v963, %v962
          %v977 = vpack.c.bf16 %v965, %v964
          %v978 = vpack.c.bf16 %v967, %v966
          %v979 = vpack.c.bf16 %v969, %v968
          %v980 = vpack.c.bf16 %v971, %v970
          %v981 = vpack.c.bf16 %v973, %v972
          %982 = vmax.xlane.f32.xlu0 %v926
          %v983 = vpop.xlane.xlu0 %982
          %984 = vmax.xlane.f32.xlu0 %v927
          %v985 = vpop.xlane.xlu0 %984
          %986 = vmax.xlane.f32.xlu0 %v928
          %v987 = vpop.xlane.xlu0 %986
          %988 = vmax.xlane.f32.xlu0 %v929
          %v989 = vpop.xlane.xlu0 %988
          %990 = vmax.xlane.f32.xlu0 %v930
          %v991 = vpop.xlane.xlu0 %990
          %992 = vmax.xlane.f32.xlu0 %v931
          %v993 = vpop.xlane.xlu0 %992
          %994 = vmax.xlane.f32.xlu0 %v932
          %v995 = vpop.xlane.xlu0 %994
          %996 = vmax.xlane.f32.xlu0 %v933
          %v997 = vpop.xlane.xlu0 %996
          %998 = vmax.xlane.f32.xlu0 %v934
          %v999 = vpop.xlane.xlu0 %998
          %1000 = vmax.xlane.f32.xlu0 %v935
          %v1001 = vpop.xlane.xlu0 %1000
          %1002 = vmax.xlane.f32.xlu0 %v936
          %v1003 = vpop.xlane.xlu0 %1002
          %1004 = vmax.xlane.f32.xlu0 %v937
          %v1005 = vpop.xlane.xlu0 %1004
          %1006 = vmax.xlane.f32.xlu0 %v938
          %v1007 = vpop.xlane.xlu0 %1006
          %1008 = vmax.xlane.f32.xlu0 %v939
          %v1009 = vpop.xlane.xlu0 %1008
          %1010 = vmax.xlane.f32.xlu0 %v940
          %v1011 = vpop.xlane.xlu0 %1010
          %1012 = vmax.xlane.f32.xlu0 %v941
          %v1013 = vpop.xlane.xlu0 %1012
          %vm1014 = vcmp.ge.f32.partialorder %v926, %v983
          %vm1015 = vcmp.ge.f32.partialorder %v927, %v985
          %vm1016 = vcmp.ge.f32.partialorder %v928, %v987
          %vm1017 = vcmp.ge.f32.partialorder %v929, %v989
          %vm1018 = vcmp.ge.f32.partialorder %v930, %v991
          %vm1019 = vcmp.ge.f32.partialorder %v931, %v993
          %vm1020 = vcmp.ge.f32.partialorder %v932, %v995
          %vm1021 = vcmp.ge.f32.partialorder %v933, %v997
          %vm1022 = vcmp.ge.f32.partialorder %v934, %v999
          %vm1023 = vcmp.ge.f32.partialorder %v935, %v1001
          %vm1024 = vcmp.ge.f32.partialorder %v936, %v1003
          %vm1025 = vcmp.ge.f32.partialorder %v937, %v1005
          %vm1026 = vcmp.ge.f32.partialorder %v938, %v1007
          %vm1027 = vcmp.ge.f32.partialorder %v939, %v1009
          %vm1028 = vcmp.ge.f32.partialorder %v940, %v1011
          %vm1029 = vcmp.ge.f32.partialorder %v941, %v1013
          %v1030 = vsel %vm1014, -1e+30, %v926
          %v1031 = vsel %vm1015, -1e+30, %v927
          %v1032 = vsel %vm1016, -1e+30, %v928
          %v1033 = vsel %vm1017, -1e+30, %v929
          %v1034 = vsel %vm1018, -1e+30, %v930
          %v1035 = vsel %vm1019, -1e+30, %v931
          %v1036 = vsel %vm1020, -1e+30, %v932
          %v1037 = vsel %vm1021, -1e+30, %v933
          %v1038 = vsel %vm1022, -1e+30, %v934
          %v1039 = vsel %vm1023, -1e+30, %v935
          %v1040 = vsel %vm1024, -1e+30, %v936
          %v1041 = vsel %vm1025, -1e+30, %v937
          %v1042 = vsel %vm1026, -1e+30, %v938
          %v1043 = vsel %vm1027, -1e+30, %v939
          %v1044 = vsel %vm1028, -1e+30, %v940
          %v1045 = vsel %vm1029, -1e+30, %v941
          %v1046 = vsel %vm1014, 1, 0
          %v1047 = vsel %vm1015, 1, 0
          %v1048 = vsel %vm1016, 1, 0
          %v1049 = vsel %vm1017, 1, 0
          %v1050 = vsel %vm1018, 1, 0
          %v1051 = vsel %vm1019, 1, 0
          %v1052 = vsel %vm1020, 1, 0
          %v1053 = vsel %vm1021, 1, 0
          %v1054 = vsel %vm1022, 1, 0
          %v1055 = vsel %vm1023, 1, 0
          %v1056 = vsel %vm1024, 1, 0
          %v1057 = vsel %vm1025, 1, 0
          %v1058 = vsel %vm1026, 1, 0
          %v1059 = vsel %vm1027, 1, 0
          %v1060 = vsel %vm1028, 1, 0
          %v1061 = vsel %vm1029, 1, 0
          %v1062 = vcvt.s32.f32 %v1046
          %v1063 = vcvt.s32.f32 %v1047
          %v1064 = vcvt.s32.f32 %v1048
          %v1065 = vcvt.s32.f32 %v1049
          %v1066 = vcvt.s32.f32 %v1050
          %v1067 = vcvt.s32.f32 %v1051
          %v1068 = vcvt.s32.f32 %v1052
          %v1069 = vcvt.s32.f32 %v1053
          %v1070 = vcvt.s32.f32 %v1054
          %v1071 = vcvt.s32.f32 %v1055
          %v1072 = vcvt.s32.f32 %v1056
          %v1073 = vcvt.s32.f32 %v1057
          %v1074 = vcvt.s32.f32 %v1058
          %v1075 = vcvt.s32.f32 %v1059
          %v1076 = vcvt.s32.f32 %v1060
          %v1077 = vcvt.s32.f32 %v1061
          %v1078 = vpack.c.bf16 %v1063, %v1062
          %v1079 = vpack.c.bf16 %v1065, %v1064
          %v1080 = vpack.c.bf16 %v1067, %v1066
          %v1081 = vpack.c.bf16 %v1069, %v1068
          %v1082 = vpack.c.bf16 %v1071, %v1070
          %v1083 = vpack.c.bf16 %v1073, %v1072
          %v1084 = vpack.c.bf16 %v1075, %v1074
          %v1085 = vpack.c.bf16 %v1077, %v1076
          %1086 = vmax.xlane.f32.xlu0 %v1030
          %v1087 = vpop.xlane.xlu0 %1086
          %1088 = vmax.xlane.f32.xlu0 %v1031
          %v1089 = vpop.xlane.xlu0 %1088
          %1090 = vmax.xlane.f32.xlu0 %v1032
          %v1091 = vpop.xlane.xlu0 %1090
          %1092 = vmax.xlane.f32.xlu0 %v1033
          %v1093 = vpop.xlane.xlu0 %1092
          %1094 = vmax.xlane.f32.xlu0 %v1034
          %v1095 = vpop.xlane.xlu0 %1094
          %1096 = vmax.xlane.f32.xlu0 %v1035
          %v1097 = vpop.xlane.xlu0 %1096
          %1098 = vmax.xlane.f32.xlu0 %v1036
          %v1099 = vpop.xlane.xlu0 %1098
          %1100 = vmax.xlane.f32.xlu0 %v1037
          %v1101 = vpop.xlane.xlu0 %1100
          %1102 = vmax.xlane.f32.xlu0 %v1038
          %v1103 = vpop.xlane.xlu0 %1102
          %1104 = vmax.xlane.f32.xlu0 %v1039
          %v1105 = vpop.xlane.xlu0 %1104
          %1106 = vmax.xlane.f32.xlu0 %v1040
          %v1107 = vpop.xlane.xlu0 %1106
          %1108 = vmax.xlane.f32.xlu0 %v1041
          %v1109 = vpop.xlane.xlu0 %1108
          %1110 = vmax.xlane.f32.xlu0 %v1042
          %v1111 = vpop.xlane.xlu0 %1110
          %1112 = vmax.xlane.f32.xlu0 %v1043
          %v1113 = vpop.xlane.xlu0 %1112
          %1114 = vmax.xlane.f32.xlu0 %v1044
          %v1115 = vpop.xlane.xlu0 %1114
          %1116 = vmax.xlane.f32.xlu0 %v1045
          %v1117 = vpop.xlane.xlu0 %1116
          %vm1118 = vcmp.ge.f32.partialorder %v1030, %v1087
          %vm1119 = vcmp.ge.f32.partialorder %v1031, %v1089
          %vm1120 = vcmp.ge.f32.partialorder %v1032, %v1091
          %vm1121 = vcmp.ge.f32.partialorder %v1033, %v1093
          %vm1122 = vcmp.ge.f32.partialorder %v1034, %v1095
          %vm1123 = vcmp.ge.f32.partialorder %v1035, %v1097
          %vm1124 = vcmp.ge.f32.partialorder %v1036, %v1099
          %vm1125 = vcmp.ge.f32.partialorder %v1037, %v1101
          %vm1126 = vcmp.ge.f32.partialorder %v1038, %v1103
          %vm1127 = vcmp.ge.f32.partialorder %v1039, %v1105
          %vm1128 = vcmp.ge.f32.partialorder %v1040, %v1107
          %vm1129 = vcmp.ge.f32.partialorder %v1041, %v1109
          %vm1130 = vcmp.ge.f32.partialorder %v1042, %v1111
          %vm1131 = vcmp.ge.f32.partialorder %v1043, %v1113
          %vm1132 = vcmp.ge.f32.partialorder %v1044, %v1115
          %vm1133 = vcmp.ge.f32.partialorder %v1045, %v1117
          %v1134 = vsel %vm1118, -1e+30, %v1030
          %v1135 = vsel %vm1119, -1e+30, %v1031
          %v1136 = vsel %vm1120, -1e+30, %v1032
          %v1137 = vsel %vm1121, -1e+30, %v1033
          %v1138 = vsel %vm1122, -1e+30, %v1034
          %v1139 = vsel %vm1123, -1e+30, %v1035
          %v1140 = vsel %vm1124, -1e+30, %v1036
          %v1141 = vsel %vm1125, -1e+30, %v1037
          %v1142 = vsel %vm1126, -1e+30, %v1038
          %v1143 = vsel %vm1127, -1e+30, %v1039
          %v1144 = vsel %vm1128, -1e+30, %v1040
          %v1145 = vsel %vm1129, -1e+30, %v1041
          %v1146 = vsel %vm1130, -1e+30, %v1042
          %v1147 = vsel %vm1131, -1e+30, %v1043
          %v1148 = vsel %vm1132, -1e+30, %v1044
          %v1149 = vsel %vm1133, -1e+30, %v1045
          %v1150 = vsel %vm1118, 1, 0
          %v1151 = vsel %vm1119, 1, 0
          %v1152 = vsel %vm1120, 1, 0
          %v1153 = vsel %vm1121, 1, 0
          %v1154 = vsel %vm1122, 1, 0
          %v1155 = vsel %vm1123, 1, 0
          %v1156 = vsel %vm1124, 1, 0
          %v1157 = vsel %vm1125, 1, 0
          %v1158 = vsel %vm1126, 1, 0
          %v1159 = vsel %vm1127, 1, 0
          %v1160 = vsel %vm1128, 1, 0
          %v1161 = vsel %vm1129, 1, 0
          %v1162 = vsel %vm1130, 1, 0
          %v1163 = vsel %vm1131, 1, 0
          %v1164 = vsel %vm1132, 1, 0
          %v1165 = vsel %vm1133, 1, 0
          %v1166 = vcvt.s32.f32 %v1150
          %v1167 = vcvt.s32.f32 %v1151
          %v1168 = vcvt.s32.f32 %v1152
          %v1169 = vcvt.s32.f32 %v1153
          %v1170 = vcvt.s32.f32 %v1154
          %v1171 = vcvt.s32.f32 %v1155
          %v1172 = vcvt.s32.f32 %v1156
          %v1173 = vcvt.s32.f32 %v1157
          %v1174 = vcvt.s32.f32 %v1158
          %v1175 = vcvt.s32.f32 %v1159
          %v1176 = vcvt.s32.f32 %v1160
          %v1177 = vcvt.s32.f32 %v1161
          %v1178 = vcvt.s32.f32 %v1162
          %v1179 = vcvt.s32.f32 %v1163
          %v1180 = vcvt.s32.f32 %v1164
          %v1181 = vcvt.s32.f32 %v1165
          %v1182 = vpack.c.bf16 %v1167, %v1166
          %v1183 = vpack.c.bf16 %v1169, %v1168
          %v1184 = vpack.c.bf16 %v1171, %v1170
          %v1185 = vpack.c.bf16 %v1173, %v1172
          %v1186 = vpack.c.bf16 %v1175, %v1174
          %v1187 = vpack.c.bf16 %v1177, %v1176
          %v1188 = vpack.c.bf16 %v1179, %v1178
          %v1189 = vpack.c.bf16 %v1181, %v1180
          %1190 = vmatprep.subr.bf16.mxu0 %v1078
          %1191 = vmatpush1.bf16.xpose.msra.mxu0 %v974
          %1192 = vmatprep.subr.bf16.mxu0 %v1079
          %1193 = vmatpush1.bf16.xpose.msra.mxu0 %v975
          %1194 = vmatprep.subr.bf16.mxu0 %v1080
          %1195 = vmatpush1.bf16.xpose.msra.mxu0 %v976
          %1196 = vmatprep.subr.bf16.mxu0 %v1081
          %1197 = vmatpush1.bf16.xpose.msra.mxu0 %v977
          %1198 = vmatprep.subr.bf16.mxu0 %v1082
          %1199 = vmatpush1.bf16.xpose.msra.mxu0 %v978
          %1200 = vmatprep.subr.bf16.mxu0 %v1083
          %1201 = vmatpush1.bf16.xpose.msra.mxu0 %v979
          %1202 = vmatprep.subr.bf16.mxu0 %v1084
          %1203 = vmatpush1.bf16.xpose.msra.mxu0 %v980
          %1204 = vmatprep.subr.bf16.mxu0 %v1085
          %1205 = vmatpush1.bf16.xpose.msra.mxu0 %v981
          %1206 = vmatprep.subr.bf16.mxu0 0
          %1207 = vmatpush1.bf16.xpose.msra.mxu0 0
          %1208 = vmatprep.subr.bf16.mxu0 0
          %1209 = vmatpush1.bf16.xpose.msra.mxu0 0
          %1210 = vmatprep.subr.bf16.mxu0 0
          %1211 = vmatpush1.bf16.xpose.msra.mxu0 0
          %1212 = vmatprep.subr.bf16.mxu0 0
          %1213 = vmatpush1.bf16.xpose.msra.mxu0 0
          %1214 = vmatprep.subr.bf16.mxu0 0
          %1215 = vmatpush1.bf16.xpose.msra.mxu0 0
          %1216 = vmatprep.subr.bf16.mxu0 0
          %1217 = vmatpush1.bf16.xpose.msra.mxu0 0
          %1218 = vmatprep.subr.bf16.mxu0 0
          %1219 = vmatpush1.bf16.xpose.msra.mxu0 0
          %1220 = vmatprep.subr.bf16.mxu0 0
          %1221 = vmatpush1.bf16.xpose.msra.mxu0 0
          %1222 = vmatprep.mubr.bf16.mxu0 %v848
          %1223 = vmatmul.mubr.bf16.gmra.mrb[0].mxu0 %v846
          %v1224 = vpop.f32.mrb[0].mxu0
          %v1225 = vadd.f32 0.0, %v1224
          %v1226 = vpop.f32.mrb[0].mxu0
          %v1227 = vpop.f32.mrb[0].mxu0
          %v1228 = vadd.f32 0.0, %v1227
          %v1229 = vpop.f32.mrb[0].mxu0
          %1230 = vmatprep.mubr.bf16.mxu0 %v849
          %1231 = vmatmul.mubr.bf16.gmra.mrb[0].mxu0 %v847
          %v1232 = vpop.f32.mrb[0].mxu0
          %v1233 = vadd.f32 0.0, %v1232
          %v1234 = vpop.f32.mrb[0].mxu0
          %v1235 = vpop.f32.mrb[0].mxu0
          %v1236 = vadd.f32 0.0, %v1235
          %v1237 = vpop.f32.mrb[0].mxu0
          %1238 = vdwg.mxu0
          %1239 = vmatprep.subr.bf16.mxu0 0
          %1240 = vmatpush1.bf16.xpose.msra.mxu0 %v1182
          %1241 = vmatprep.subr.bf16.mxu0 0
          %1242 = vmatpush1.bf16.xpose.msra.mxu0 %v1183
          %1243 = vmatprep.subr.bf16.mxu0 0
          %1244 = vmatpush1.bf16.xpose.msra.mxu0 %v1184
          %1245 = vmatprep.subr.bf16.mxu0 0
          %1246 = vmatpush1.bf16.xpose.msra.mxu0 %v1185
          %1247 = vmatprep.subr.bf16.mxu0 0
          %1248 = vmatpush1.bf16.xpose.msra.mxu0 %v1186
          %1249 = vmatprep.subr.bf16.mxu0 0
          %1250 = vmatpush1.bf16.xpose.msra.mxu0 %v1187
          %1251 = vmatprep.subr.bf16.mxu0 0
          %1252 = vmatpush1.bf16.xpose.msra.mxu0 %v1188
          %1253 = vmatprep.subr.bf16.mxu0 0
          %1254 = vmatpush1.bf16.xpose.msra.mxu0 %v1189
          %1255 = vmatprep.subr.bf16.mxu0 0
          %1256 = vmatpush1.bf16.xpose.msra.mxu0 0
          %1257 = vmatprep.subr.bf16.mxu0 0
          %1258 = vmatpush1.bf16.xpose.msra.mxu0 0
          %1259 = vmatprep.subr.bf16.mxu0 0
          %1260 = vmatpush1.bf16.xpose.msra.mxu0 0
          %1261 = vmatprep.subr.bf16.mxu0 0
          %1262 = vmatpush1.bf16.xpose.msra.mxu0 0
          %1263 = vmatprep.subr.bf16.mxu0 0
          %1264 = vmatpush1.bf16.xpose.msra.mxu0 0
          %1265 = vmatprep.subr.bf16.mxu0 0
          %1266 = vmatpush1.bf16.xpose.msra.mxu0 0
          %1267 = vmatprep.subr.bf16.mxu0 0
          %1268 = vmatpush1.bf16.xpose.msra.mxu0 0
          %1269 = vmatprep.subr.bf16.mxu0 0
          %1270 = vmatpush1.bf16.xpose.msra.mxu0 0
          %1271 = vmatprep.mubr.bf16.mxu0 0
          %1272 = vmatmul.mubr.bf16.gmra.mrb[0].mxu0 %v850
          %v1273 = vpop.f32.mrb[0].mxu0
          %v1274 = vadd.f32 %v1225, %v1273
          %v1275 = vpop.f32.mrb[0].mxu0
          %v1276 = vpop.f32.mrb[0].mxu0
          %v1277 = vadd.f32 %v1228, %v1276
          %v1278 = vpop.f32.mrb[0].mxu0
          %1279 = vmatprep.mubr.bf16.mxu0 0
          %1280 = vmatmul.mubr.bf16.gmra.mrb[0].mxu0 %v851
          %v1281 = vpop.f32.mrb[0].mxu0
          %v1282 = vadd.f32 %v1233, %v1281
          %v1283 = vpop.f32.mrb[0].mxu0
          %v1284 = vpop.f32.mrb[0].mxu0
          %v1285 = vadd.f32 %v1236, %v1284
          %v1286 = vpop.f32.mrb[0].mxu0
          %1287 = vdwg.mxu0
          %v1288 = vsub.f32 %v842, %v1274
          %v1289 = vsub.f32 %v843, %v1277
          %v1290 = vsub.f32 %v844, %v1282
          %v1291 = vsub.f32 %v845, %v1285
          %v1292 = vmax.f32 %v1288, 0.0
          %v1293 = vmax.f32 %v1289, 0.0
          %v1294 = vmax.f32 %v1290, 0.0
          %v1295 = vmax.f32 %v1291, 0.0
          %v1296 = vpack.c.bf16 %v1293, %v1292
          %v1297 = vpack.c.bf16 %v1295, %v1294
          %s1298 = smul.u32 %s853, 4
          %s1299 = smul.addr %s1298, 4
          %s1300 = scalar_lea.vmem %s2, %s1299
          %v1301 = vld [vmem:[%s1300] sm:$0xf]
          %v1302 = vld [vmem:[%s1300 + $0x4] sm:$0xf]
          %v1303 = vld [vmem:[%s1300 + $0x8] sm:$0xf]
          %v1304 = vld [vmem:[%s1300 + $0xc] sm:$0xf]
          %v1309 = vunpack.c.l.b16 %v1301
          %v1310 = vunpack.c.l.b16 %v1302
          %v1311 = vunpack.c.l.b16 %v1303
          %v1312 = vunpack.c.l.b16 %v1304
          %v1313 = vpack.c.b16 %v1310, %v1309
          %v1314 = vpack.c.b16 %v1312, %v1311
          %v1316 = vsel %vm311, %v1313, 0
          %v1319 = vsel %vm311, %v1314, 0
          %1321 = vmatprep.subr.bf16.mxu0 0
          %1322 = vmatpush1.bf16.msra.mxu0 %v1296
          %1323 = vmatprep.subr.bf16.mxu0 0
          %1324 = vmatpush1.bf16.msra.mxu0 %v1297
          %1325 = vmatprep.subr.bf16.mxu0 0
          %1326 = vmatpush1.bf16.msra.mxu0 0
          %1327 = vmatprep.subr.bf16.mxu0 0
          %1328 = vmatpush1.bf16.msra.mxu0 0
          %1329 = vmatprep.subr.bf16.mxu0 0
          %1330 = vmatpush1.bf16.msra.mxu0 0
          %1331 = vmatprep.subr.bf16.mxu0 0
          %1332 = vmatpush1.bf16.msra.mxu0 0
          %1333 = vmatprep.subr.bf16.mxu0 0
          %1334 = vmatpush1.bf16.msra.mxu0 0
          %1335 = vmatprep.subr.bf16.mxu0 0
          %1336 = vmatpush1.bf16.msra.mxu0 0
          %1337 = vmatprep.subr.bf16.mxu0 0
          %1338 = vmatpush1.bf16.msra.mxu0 0
          %1339 = vmatprep.subr.bf16.mxu0 0
          %1340 = vmatpush1.bf16.msra.mxu0 0
          %1341 = vmatprep.subr.bf16.mxu0 0
          %1342 = vmatpush1.bf16.msra.mxu0 0
          %1343 = vmatprep.subr.bf16.mxu0 0
          %1344 = vmatpush1.bf16.msra.mxu0 0
          %1345 = vmatprep.subr.bf16.mxu0 0
          %1346 = vmatpush1.bf16.msra.mxu0 0
          %1347 = vmatprep.subr.bf16.mxu0 0
          %1348 = vmatpush1.bf16.msra.mxu0 0
          %1349 = vmatprep.subr.bf16.mxu0 0
          %1350 = vmatpush1.bf16.msra.mxu0 0
          %1351 = vmatprep.subr.bf16.mxu0 0
          %1352 = vmatpush1.bf16.msra.mxu0 0
          %1353 = vmatprep.mubr.bf16.mxu0 0
          %1354 = vmatmul.mubr.bf16.gmra.mrb[0].mxu0 %v1316
          %v1355 = vpop.f32.mrb[0].mxu0
          %v1356 = vadd.f32 0.0, %v1355
          %v1357 = vpop.f32.mrb[0].mxu0
          %v1358 = vpop.f32.mrb[0].mxu0
          %v1359 = vadd.f32 0.0, %v1358
          %v1360 = vpop.f32.mrb[0].mxu0
          %1361 = vmatprep.mubr.bf16.mxu0 0
          %1362 = vmatmul.mubr.bf16.gmra.mrb[0].mxu0 %v1319
          %v1363 = vpop.f32.mrb[0].mxu0
          %v1364 = vadd.f32 0.0, %v1363
          %v1365 = vpop.f32.mrb[0].mxu0
          %v1366 = vpop.f32.mrb[0].mxu0
          %v1367 = vadd.f32 0.0, %v1366
          %v1368 = vpop.f32.mrb[0].mxu0
          %1369 = vdwg.mxu0
          %v1370 = vadd.f32 %v874, %v1356
          %v1371 = vadd.f32 %v875, %v1359
          %v1372 = vadd.f32 %v876, %v1364
          %v1373 = vadd.f32 %v877, %v1367
        $region45: #{tpu_custom_call.1} parent=35 // loop_footer
          %s857 = sadd.s32 1, %s853
        $region46: #{tpu_custom_call.1} parent=35 // loop_footer_branch
          %852 = sbr.rel target = $region42
        $region47: #{tpu_custom_call.1} parent=35 // loop_exit
          _
        %v1374 = vmax.f32 %v874, 0.0
        %v1375 = vmax.f32 %v875, 0.0
        %v1376 = vmax.f32 %v876, 0.0
        %v1377 = vmax.f32 %v877, 0.0
        %1378 = vst [vmem:[%s216] sm:$0xff] %v1374
        %1379 = vst [vmem:[%s216 + $0x8] sm:$0xff] %v1375
        %1380 = vst [vmem:[%s216 + $0x10] sm:$0xff] %v1376
        %1381 = vst [vmem:[%s216 + $0x18] sm:$0xff] %v1377
        %s1382 = scalar_lea.vmem %s192, 32 [#allocation2]
        %v1383 = vld [vmem:[%s1382] sm:$0xff]
        %v1384 = vld [vmem:[%s1382 + $0x8] sm:$0xff]
        %v1385 = vld [vmem:[%s1382 + $0x10] sm:$0xff]
        %v1386 = vld [vmem:[%s1382 + $0x18] sm:$0xff]
        %v1387 = vpack.c.bf16 %v1384, %v1383
        %v1388 = vpack.c.bf16 %v1386, %v1385
        %v1389 = vmul.f32 %v1383, %v1383
        %v1390 = vmul.f32 %v1384, %v1384
        %v1391 = vmul.f32 %v1385, %v1385
        %v1392 = vmul.f32 %v1386, %v1386
        %v1393 = vadd.f32 %v1389, %v1390
        %v1394 = vadd.f32 %v1393, %v1391
        %v1395 = vadd.f32 %v1394, %v1392
        %v1396 = vrot.slane %v1395, 4
        %v1397 = vadd.f32 %v1395, %v1396
        %v1398 = vrot.slane %v1397, 2
        %v1399 = vadd.f32 %v1397, %v1398
        %v1400 = vrot.slane %v1399, 1
        %v1401 = vadd.f32 %v1399, %v1400
        %1402 = vxpose.xlu0.b32.start [1/16] %v1383, 128
        %1403 = vxpose.xlu0.b32.cont [2/16] %v1384, 128
        %1404 = vxpose.xlu0.b32.cont [3/16] %v1385, 128
        %1405 = vxpose.xlu0.b32.cont [4/16] %v1386, 128
        %1406 = vxpose.xlu0.b32.cont [5/16] 0.0, 128
        %1407 = vxpose.xlu0.b32.cont [6/16] 0.0, 128
        %1408 = vxpose.xlu0.b32.cont [7/16] 0.0, 128
        %1409 = vxpose.xlu0.b32.cont [8/16] 0.0, 128
        %1410 = vxpose.xlu0.b32.cont [9/16] 0.0, 128
        %1411 = vxpose.xlu0.b32.cont [10/16] 0.0, 128
        %1412 = vxpose.xlu0.b32.cont [11/16] 0.0, 128
        %1413 = vxpose.xlu0.b32.cont [12/16] 0.0, 128
        %1414 = vxpose.xlu0.b32.cont [13/16] 0.0, 128
        %1415 = vxpose.xlu0.b32.cont [14/16] 0.0, 128
        %1416 = vxpose.xlu0.b32.cont [15/16] 0.0, 128
        %1417 = vxpose.xlu0.b32.end [16/16] 0.0, 128
        %v1418 = vpop.trf.xlu0
        %v1419 = vpop.trf.xlu0
        %v1420 = vpop.trf.xlu0
        %v1421 = vpop.trf.xlu0
        %v1422 = vpop.trf.xlu0
        %v1423 = vpop.trf.xlu0
        %v1424 = vpop.trf.xlu0
        %v1425 = vpop.trf.xlu0
        %v1426 = vpop.trf.xlu0
        %v1427 = vpop.trf.xlu0
        %v1428 = vpop.trf.xlu0
        %v1429 = vpop.trf.xlu0
        %v1430 = vpop.trf.xlu0
        %v1431 = vpop.trf.xlu0
        %v1432 = vpop.trf.xlu0
        %v1433 = vpop.trf.xlu0
        %v1435 = vsel %vm311, %v1418, 0
        %v1438 = vsel %vm311, %v1419, 0
        %v1441 = vsel %vm311, %v1420, 0
        %v1444 = vsel %vm311, %v1421, 0
        %v1447 = vsel %vm311, %v1422, 0
        %v1450 = vsel %vm311, %v1423, 0
        %v1453 = vsel %vm311, %v1424, 0
        %v1456 = vsel %vm311, %v1425, 0
        %v1459 = vsel %vm311, %v1426, 0
        %v1462 = vsel %vm311, %v1427, 0
        %v1465 = vsel %vm311, %v1428, 0
        %v1468 = vsel %vm311, %v1429, 0
        %v1471 = vsel %vm311, %v1430, 0
        %v1474 = vsel %vm311, %v1431, 0
        %v1477 = vsel %vm311, %v1432, 0
        %v1480 = vsel %vm311, %v1433, 0
        %1482 = vmatprep.subr.mxu0 0.0
        %1483 = vmatpush1.msra.mxu0 %v1383
        %1484 = vmatprep.subr.mxu0 0.0
        %1485 = vmatpush1.msra.mxu0 %v1384
        %1486 = vmatprep.subr.mxu0 0.0
        %1487 = vmatpush1.msra.mxu0 %v1385
        %1488 = vmatprep.subr.mxu0 0.0
        %1489 = vmatpush1.msra.mxu0 %v1386
        %1490 = vmatprep.subr.mxu0 0.0
        %1491 = vmatpush1.msra.mxu0 0.0
        %1492 = vmatprep.subr.mxu0 0.0
        %1493 = vmatpush1.msra.mxu0 0.0
        %1494 = vmatprep.subr.mxu0 0.0
        %1495 = vmatpush1.msra.mxu0 0.0
        %1496 = vmatprep.subr.mxu0 0.0
        %1497 = vmatpush1.msra.mxu0 0.0
        %1498 = vmatprep.subr.mxu0 0.0
        %1499 = vmatpush1.msra.mxu0 0.0
        %1500 = vmatprep.subr.mxu0 0.0
        %1501 = vmatpush1.msra.mxu0 0.0
        %1502 = vmatprep.subr.mxu0 0.0
        %1503 = vmatpush1.msra.mxu0 0.0
        %1504 = vmatprep.subr.mxu0 0.0
        %1505 = vmatpush1.msra.mxu0 0.0
        %1506 = vmatprep.subr.mxu0 0.0
        %1507 = vmatpush1.msra.mxu0 0.0
        %1508 = vmatprep.subr.mxu0 0.0
        %1509 = vmatpush1.msra.mxu0 0.0
        %1510 = vmatprep.subr.mxu0 0.0
        %1511 = vmatpush1.msra.mxu0 0.0
        %1512 = vmatprep.subr.mxu0 0.0
        %1513 = vmatpush1.msra.mxu0 0.0
        %1514 = vmatprep.subr.mxu0 0.0
        %1515 = vmatpush1.msra.mxu0 0.0
        %1516 = vmatprep.subr.mxu0 0.0
        %1517 = vmatpush1.msra.mxu0 0.0
        %1518 = vmatprep.subr.mxu0 0.0
        %1519 = vmatpush1.msra.mxu0 0.0
        %1520 = vmatprep.subr.mxu0 0.0
        %1521 = vmatpush1.msra.mxu0 0.0
        %1522 = vmatprep.subr.mxu0 0.0
        %1523 = vmatpush1.msra.mxu0 0.0
        %1524 = vmatprep.subr.mxu0 0.0
        %1525 = vmatpush1.msra.mxu0 0.0
        %1526 = vmatprep.subr.mxu0 0.0
        %1527 = vmatpush1.msra.mxu0 0.0
        %1528 = vmatprep.subr.mxu0 0.0
        %1529 = vmatpush1.msra.mxu0 0.0
        %1530 = vmatprep.subr.mxu0 0.0
        %1531 = vmatpush1.msra.mxu0 0.0
        %1532 = vmatprep.subr.mxu0 0.0
        %1533 = vmatpush1.msra.mxu0 0.0
        %1534 = vmatprep.subr.mxu0 0.0
        %1535 = vmatpush1.msra.mxu0 0.0
        %1536 = vmatprep.subr.mxu0 0.0
        %1537 = vmatpush1.msra.mxu0 0.0
        %1538 = vmatprep.subr.mxu0 0.0
        %1539 = vmatpush1.msra.mxu0 0.0
        %1540 = vmatprep.subr.mxu0 0.0
        %1541 = vmatpush1.msra.mxu0 0.0
        %1542 = vmatprep.subr.mxu0 0.0
        %1543 = vmatpush1.msra.mxu0 0.0
        %1544 = vmatprep.subr.mxu0 0.0
        %1545 = vmatpush1.msra.mxu0 0.0
        %1546 = vmatprep.mubr.f32.mxu0 0.0
        %1547 = vmatmul.mubr.f32.gmra.mrb[0].mxu0 %v1435
        %v1548 = vpop.f32.mrb[0].mxu0
        %v1549 = vadd.f32 0.0, %v1548
        %v1550 = vpop.f32.mrb[0].mxu0
        %1551 = vmatprep.mubr.f32.mxu0 0.0
        %1552 = vmatmul.mubr.f32.gmra.mrb[0].mxu0 %v1438
        %v1553 = vpop.f32.mrb[0].mxu0
        %v1554 = vadd.f32 0.0, %v1553
        %v1555 = vpop.f32.mrb[0].mxu0
        %1556 = vmatprep.mubr.f32.mxu0 0.0
        %1557 = vmatmul.mubr.f32.gmra.mrb[0].mxu0 %v1441
        %v1558 = vpop.f32.mrb[0].mxu0
        %v1559 = vadd.f32 0.0, %v1558
        %v1560 = vpop.f32.mrb[0].mxu0
        %1561 = vmatprep.mubr.f32.mxu0 0.0
        %1562 = vmatmul.mubr.f32.gmra.mrb[0].mxu0 %v1444
        %v1563 = vpop.f32.mrb[0].mxu0
        %v1564 = vadd.f32 0.0, %v1563
        %v1565 = vpop.f32.mrb[0].mxu0
        %1566 = vmatprep.mubr.f32.mxu0 0.0
        %1567 = vmatmul.mubr.f32.gmra.mrb[0].mxu0 %v1447
        %v1568 = vpop.f32.mrb[0].mxu0
        %v1569 = vadd.f32 0.0, %v1568
        %v1570 = vpop.f32.mrb[0].mxu0
        %1571 = vmatprep.mubr.f32.mxu0 0.0
        %1572 = vmatmul.mubr.f32.gmra.mrb[0].mxu0 %v1450
        %v1573 = vpop.f32.mrb[0].mxu0
        %v1574 = vadd.f32 0.0, %v1573
        %v1575 = vpop.f32.mrb[0].mxu0
        %1576 = vmatprep.mubr.f32.mxu0 0.0
        %1577 = vmatmul.mubr.f32.gmra.mrb[0].mxu0 %v1453
        %v1578 = vpop.f32.mrb[0].mxu0
        %v1579 = vadd.f32 0.0, %v1578
        %v1580 = vpop.f32.mrb[0].mxu0
        %1581 = vmatprep.mubr.f32.mxu0 0.0
        %1582 = vmatmul.mubr.f32.gmra.mrb[0].mxu0 %v1456
        %v1583 = vpop.f32.mrb[0].mxu0
        %v1584 = vadd.f32 0.0, %v1583
        %v1585 = vpop.f32.mrb[0].mxu0
        %1586 = vmatprep.mubr.f32.mxu0 0.0
        %1587 = vmatmul.mubr.f32.gmra.mrb[0].mxu0 %v1459
        %v1588 = vpop.f32.mrb[0].mxu0
        %v1589 = vadd.f32 0.0, %v1588
        %v1590 = vpop.f32.mrb[0].mxu0
        %1591 = vmatprep.mubr.f32.mxu0 0.0
        %1592 = vmatmul.mubr.f32.gmra.mrb[0].mxu0 %v1462
        %v1593 = vpop.f32.mrb[0].mxu0
        %v1594 = vadd.f32 0.0, %v1593
        %v1595 = vpop.f32.mrb[0].mxu0
        %1596 = vmatprep.mubr.f32.mxu0 0.0
        %1597 = vmatmul.mubr.f32.gmra.mrb[0].mxu0 %v1465
        %v1598 = vpop.f32.mrb[0].mxu0
        %v1599 = vadd.f32 0.0, %v1598
        %v1600 = vpop.f32.mrb[0].mxu0
        %1601 = vmatprep.mubr.f32.mxu0 0.0
        %1602 = vmatmul.mubr.f32.gmra.mrb[0].mxu0 %v1468
        %v1603 = vpop.f32.mrb[0].mxu0
        %v1604 = vadd.f32 0.0, %v1603
        %v1605 = vpop.f32.mrb[0].mxu0
        %1606 = vmatprep.mubr.f32.mxu0 0.0
        %1607 = vmatmul.mubr.f32.gmra.mrb[0].mxu0 %v1471
        %v1608 = vpop.f32.mrb[0].mxu0
        %v1609 = vadd.f32 0.0, %v1608
        %v1610 = vpop.f32.mrb[0].mxu0
        %1611 = vmatprep.mubr.f32.mxu0 0.0
        %1612 = vmatmul.mubr.f32.gmra.mrb[0].mxu0 %v1474
        %v1613 = vpop.f32.mrb[0].mxu0
        %v1614 = vadd.f32 0.0, %v1613
        %v1615 = vpop.f32.mrb[0].mxu0
        %1616 = vmatprep.mubr.f32.mxu0 0.0
        %1617 = vmatmul.mubr.f32.gmra.mrb[0].mxu0 %v1477
        %v1618 = vpop.f32.mrb[0].mxu0
        %v1619 = vadd.f32 0.0, %v1618
        %v1620 = vpop.f32.mrb[0].mxu0
        %1621 = vmatprep.mubr.f32.mxu0 0.0
        %1622 = vmatmul.mubr.f32.gmra.mrb[0].mxu0 %v1480
        %v1623 = vpop.f32.mrb[0].mxu0
        %v1624 = vadd.f32 0.0, %v1623
        %v1625 = vpop.f32.mrb[0].mxu0
        %1626 = vdwg.mxu0
        %v1627 = vmul.f32 %v1549, 2.0
        %v1628 = vmul.f32 %v1554, 2.0
        %v1629 = vmul.f32 %v1559, 2.0
        %v1630 = vmul.f32 %v1564, 2.0
        %v1631 = vmul.f32 %v1569, 2.0
        %v1632 = vmul.f32 %v1574, 2.0
        %v1633 = vmul.f32 %v1579, 2.0
        %v1634 = vmul.f32 %v1584, 2.0
        %v1635 = vmul.f32 %v1589, 2.0
        %v1636 = vmul.f32 %v1594, 2.0
        %v1637 = vmul.f32 %v1599, 2.0
        %v1638 = vmul.f32 %v1604, 2.0
        %v1639 = vmul.f32 %v1609, 2.0
        %v1640 = vmul.f32 %v1614, 2.0
        %v1641 = vmul.f32 %v1619, 2.0
        %v1642 = vmul.f32 %v1624, 2.0
        %v1643 = vsub.f32 %v1627, %v1401
        %v1644 = vsub.f32 %v1628, %v1401
        %v1645 = vsub.f32 %v1629, %v1401
        %v1646 = vsub.f32 %v1630, %v1401
        %v1647 = vsub.f32 %v1631, %v1401
        %v1648 = vsub.f32 %v1632, %v1401
        %v1649 = vsub.f32 %v1633, %v1401
        %v1650 = vsub.f32 %v1634, %v1401
        %v1651 = vsub.f32 %v1635, %v1401
        %v1652 = vsub.f32 %v1636, %v1401
        %v1653 = vsub.f32 %v1637, %v1401
        %v1654 = vsub.f32 %v1638, %v1401
        %v1655 = vsub.f32 %v1639, %v1401
        %v1656 = vsub.f32 %v1640, %v1401
        %v1657 = vsub.f32 %v1641, %v1401
        %v1658 = vsub.f32 %v1642, %v1401
        %1659 = vxpose.xlu0.b32.start [1/16] %v1401, 128
        %1660 = vxpose.xlu0.b32.cont [2/16] 0.0, 128
        %1661 = vxpose.xlu0.b32.cont [3/16] 0.0, 128
        %1662 = vxpose.xlu0.b32.cont [4/16] 0.0, 128
        %1663 = vxpose.xlu0.b32.cont [5/16] 0.0, 128
        %1664 = vxpose.xlu0.b32.cont [6/16] 0.0, 128
        %1665 = vxpose.xlu0.b32.cont [7/16] 0.0, 128
        %1666 = vxpose.xlu0.b32.cont [8/16] 0.0, 128
        %1667 = vxpose.xlu0.b32.cont [9/16] 0.0, 128
        %1668 = vxpose.xlu0.b32.cont [10/16] 0.0, 128
        %1669 = vxpose.xlu0.b32.cont [11/16] 0.0, 128
        %1670 = vxpose.xlu0.b32.cont [12/16] 0.0, 128
        %1671 = vxpose.xlu0.b32.cont [13/16] 0.0, 128
        %1672 = vxpose.xlu0.b32.cont [14/16] 0.0, 128
        %1673 = vxpose.xlu0.b32.cont [15/16] 0.0, 128
        %1674 = vxpose.xlu0.b32.end [16/16] 0.0, 128
        %v1675 = vpop.trf.xlu0
        %v1676 = vpop.trf.xlu0
        %v1677 = vpop.trf.xlu0
        %v1678 = vpop.trf.xlu0
        %v1679 = vpop.trf.xlu0
        %v1680 = vpop.trf.xlu0
        %v1681 = vpop.trf.xlu0
        %v1682 = vpop.trf.xlu0
        %v1683 = vpop.trf.xlu0
        %v1684 = vpop.trf.xlu0
        %v1685 = vpop.trf.xlu0
        %v1686 = vpop.trf.xlu0
        %v1687 = vpop.trf.xlu0
        %v1688 = vpop.trf.xlu0
        %v1689 = vpop.trf.xlu0
        %v1690 = vpop.trf.xlu0
        %1692 = vset.pattern.permute.xlu0 0
        %1693 = vperm.xlu0 %1692, %v1675
        %v1694 = vpop.permute.xlu0 %1693
        %1697 = vset.pattern.permute.xlu0 0
        %1698 = vperm.xlu0 %1697, %v1676
        %v1699 = vpop.permute.xlu0 %1698
        %1702 = vset.pattern.permute.xlu0 0
        %1703 = vperm.xlu0 %1702, %v1677
        %v1704 = vpop.permute.xlu0 %1703
        %1707 = vset.pattern.permute.xlu0 0
        %1708 = vperm.xlu0 %1707, %v1678
        %v1709 = vpop.permute.xlu0 %1708
        %1712 = vset.pattern.permute.xlu0 0
        %1713 = vperm.xlu0 %1712, %v1679
        %v1714 = vpop.permute.xlu0 %1713
        %1717 = vset.pattern.permute.xlu0 0
        %1718 = vperm.xlu0 %1717, %v1680
        %v1719 = vpop.permute.xlu0 %1718
        %1722 = vset.pattern.permute.xlu0 0
        %1723 = vperm.xlu0 %1722, %v1681
        %v1724 = vpop.permute.xlu0 %1723
        %1727 = vset.pattern.permute.xlu0 0
        %1728 = vperm.xlu0 %1727, %v1682
        %v1729 = vpop.permute.xlu0 %1728
        %1732 = vset.pattern.permute.xlu0 0
        %1733 = vperm.xlu0 %1732, %v1683
        %v1734 = vpop.permute.xlu0 %1733
        %1737 = vset.pattern.permute.xlu0 0
        %1738 = vperm.xlu0 %1737, %v1684
        %v1739 = vpop.permute.xlu0 %1738
        %1742 = vset.pattern.permute.xlu0 0
        %1743 = vperm.xlu0 %1742, %v1685
        %v1744 = vpop.permute.xlu0 %1743
        %1747 = vset.pattern.permute.xlu0 0
        %1748 = vperm.xlu0 %1747, %v1686
        %v1749 = vpop.permute.xlu0 %1748
        %1752 = vset.pattern.permute.xlu0 0
        %1753 = vperm.xlu0 %1752, %v1687
        %v1754 = vpop.permute.xlu0 %1753
        %1757 = vset.pattern.permute.xlu0 0
        %1758 = vperm.xlu0 %1757, %v1688
        %v1759 = vpop.permute.xlu0 %1758
        %1762 = vset.pattern.permute.xlu0 0
        %1763 = vperm.xlu0 %1762, %v1689
        %v1764 = vpop.permute.xlu0 %1763
        %1767 = vset.pattern.permute.xlu0 0
        %1768 = vperm.xlu0 %1767, %v1690
        %v1769 = vpop.permute.xlu0 %1768
        %v1771 = vsub.f32 %v1643, %v1694
        %v1772 = vsub.f32 %v1644, %v1699
        %v1773 = vsub.f32 %v1645, %v1704
        %v1774 = vsub.f32 %v1646, %v1709
        %v1775 = vsub.f32 %v1647, %v1714
        %v1776 = vsub.f32 %v1648, %v1719
        %v1777 = vsub.f32 %v1649, %v1724
        %v1778 = vsub.f32 %v1650, %v1729
        %v1779 = vsub.f32 %v1651, %v1734
        %v1780 = vsub.f32 %v1652, %v1739
        %v1781 = vsub.f32 %v1653, %v1744
        %v1782 = vsub.f32 %v1654, %v1749
        %v1783 = vsub.f32 %v1655, %v1754
        %v1784 = vsub.f32 %v1656, %v1759
        %v1785 = vsub.f32 %v1657, %v1764
        %v1786 = vsub.f32 %v1658, %v1769
        %1787 = vmatprep.subr.bf16.mxu0 0
        %1788 = vmatpush1.bf16.msra.mxu0 %v1387
        %1789 = vmatprep.subr.bf16.mxu0 0
        %1790 = vmatpush1.bf16.msra.mxu0 %v1388
        %1791 = vmatprep.subr.bf16.mxu0 0
        %1792 = vmatpush1.bf16.msra.mxu0 0
        %1793 = vmatprep.subr.bf16.mxu0 0
        %1794 = vmatpush1.bf16.msra.mxu0 0
        %1795 = vmatprep.subr.bf16.mxu0 0
        %1796 = vmatpush1.bf16.msra.mxu0 0
        %1797 = vmatprep.subr.bf16.mxu0 0
        %1798 = vmatpush1.bf16.msra.mxu0 0
        %1799 = vmatprep.subr.bf16.mxu0 0
        %1800 = vmatpush1.bf16.msra.mxu0 0
        %1801 = vmatprep.subr.bf16.mxu0 0
        %1802 = vmatpush1.bf16.msra.mxu0 0
        %1803 = vmatprep.subr.bf16.mxu0 0
        %1804 = vmatpush1.bf16.msra.mxu0 0
        %1805 = vmatprep.subr.bf16.mxu0 0
        %1806 = vmatpush1.bf16.msra.mxu0 0
        %1807 = vmatprep.subr.bf16.mxu0 0
        %1808 = vmatpush1.bf16.msra.mxu0 0
        %1809 = vmatprep.subr.bf16.mxu0 0
        %1810 = vmatpush1.bf16.msra.mxu0 0
        %1811 = vmatprep.subr.bf16.mxu0 0
        %1812 = vmatpush1.bf16.msra.mxu0 0
        %1813 = vmatprep.subr.bf16.mxu0 0
        %1814 = vmatpush1.bf16.msra.mxu0 0
        %1815 = vmatprep.subr.bf16.mxu0 0
        %1816 = vmatpush1.bf16.msra.mxu0 0
        %1817 = vmatprep.subr.bf16.mxu0 0
        %1818 = vmatpush1.bf16.msra.mxu0 0
        %1819 = vmatprep.mubr.bf16.mxu0 0
        %1820 = vmatmul.mubr.bf16.gmra.mrb[0].mxu0 %v706
        %v1821 = vpop.f32.mrb[0].mxu0
        %v1822 = vadd.f32 0.0, %v1821
        %v1823 = vpop.f32.mrb[0].mxu0
        %v1824 = vpop.f32.mrb[0].mxu0
        %v1825 = vadd.f32 0.0, %v1824
        %v1826 = vpop.f32.mrb[0].mxu0
        %1827 = vmatprep.mubr.bf16.mxu0 0
        %1828 = vmatmul.mubr.bf16.gmra.mrb[0].mxu0 %v709
        %v1829 = vpop.f32.mrb[0].mxu0
        %v1830 = vadd.f32 0.0, %v1829
        %v1831 = vpop.f32.mrb[0].mxu0
        %v1832 = vpop.f32.mrb[0].mxu0
        %v1833 = vadd.f32 0.0, %v1832
        %v1834 = vpop.f32.mrb[0].mxu0
        %1835 = vmatprep.mubr.bf16.mxu0 0
        %1836 = vmatmul.mubr.bf16.gmra.mrb[0].mxu0 %v712
        %v1837 = vpop.f32.mrb[0].mxu0
        %v1838 = vadd.f32 0.0, %v1837
        %v1839 = vpop.f32.mrb[0].mxu0
        %v1840 = vpop.f32.mrb[0].mxu0
        %v1841 = vadd.f32 0.0, %v1840
        %v1842 = vpop.f32.mrb[0].mxu0
        %1843 = vmatprep.mubr.bf16.mxu0 0
        %1844 = vmatmul.mubr.bf16.gmra.mrb[0].mxu0 %v715
        %v1845 = vpop.f32.mrb[0].mxu0
        %v1846 = vadd.f32 0.0, %v1845
        %v1847 = vpop.f32.mrb[0].mxu0
        %v1848 = vpop.f32.mrb[0].mxu0
        %v1849 = vadd.f32 0.0, %v1848
        %v1850 = vpop.f32.mrb[0].mxu0
        %1851 = vmatprep.mubr.bf16.mxu0 0
        %1852 = vmatmul.mubr.bf16.gmra.mrb[0].mxu0 %v718
        %v1853 = vpop.f32.mrb[0].mxu0
        %v1854 = vadd.f32 0.0, %v1853
        %v1855 = vpop.f32.mrb[0].mxu0
        %v1856 = vpop.f32.mrb[0].mxu0
        %v1857 = vadd.f32 0.0, %v1856
        %v1858 = vpop.f32.mrb[0].mxu0
        %1859 = vmatprep.mubr.bf16.mxu0 0
        %1860 = vmatmul.mubr.bf16.gmra.mrb[0].mxu0 %v721
        %v1861 = vpop.f32.mrb[0].mxu0
        %v1862 = vadd.f32 0.0, %v1861
        %v1863 = vpop.f32.mrb[0].mxu0
        %v1864 = vpop.f32.mrb[0].mxu0
        %v1865 = vadd.f32 0.0, %v1864
        %v1866 = vpop.f32.mrb[0].mxu0
        %1867 = vmatprep.mubr.bf16.mxu0 0
        %1868 = vmatmul.mubr.bf16.gmra.mrb[0].mxu0 %v724
        %v1869 = vpop.f32.mrb[0].mxu0
        %v1870 = vadd.f32 0.0, %v1869
        %v1871 = vpop.f32.mrb[0].mxu0
        %v1872 = vpop.f32.mrb[0].mxu0
        %v1873 = vadd.f32 0.0, %v1872
        %v1874 = vpop.f32.mrb[0].mxu0
        %1875 = vmatprep.mubr.bf16.mxu0 0
        %1876 = vmatmul.mubr.bf16.gmra.mrb[0].mxu0 %v727
        %v1877 = vpop.f32.mrb[0].mxu0
        %v1878 = vadd.f32 0.0, %v1877
        %v1879 = vpop.f32.mrb[0].mxu0
        %v1880 = vpop.f32.mrb[0].mxu0
        %v1881 = vadd.f32 0.0, %v1880
        %v1882 = vpop.f32.mrb[0].mxu0
        %1883 = vdwg.mxu0
        %v1884 = vadd.f32 %v1822, %v828
        %v1885 = vadd.f32 %v1825, %v832
        %v1886 = vadd.f32 %v1830, %v836
        %v1887 = vadd.f32 %v1833, %v840
        %v1888 = vpack.c.bf16 %v1841, %v1838
        %v1889 = vpack.c.bf16 %v1849, %v1846
        %v1890 = vpack.c.bf16 %v1857, %v1854
        %v1891 = vpack.c.bf16 %v1865, %v1862
        %v1892 = vpack.c.bf16 %v1873, %v1870
        %v1893 = vpack.c.bf16 %v1881, %v1878
        loop: start=0, step=1, limit=3
        $region48: #{tpu_custom_call.1} parent=35 // loop_pre_header
          _
        $region49: #{tpu_custom_call.1} parent=35 // loop_header
          %s1895 = sphi 0, %s1899
          %p1896 = scmp.ge.s32.totalorder %s1895, 3
          %v1900 = vphi %v1771, %v2176
          %v1901 = vphi %v1772, %v2177
          %v1902 = vphi %v1773, %v2178
          %v1903 = vphi %v1774, %v2179
          %v1904 = vphi %v1775, %v2180
          %v1905 = vphi %v1776, %v2181
          %v1906 = vphi %v1777, %v2182
          %v1907 = vphi %v1778, %v2183
          %v1908 = vphi %v1779, %v2184
          %v1909 = vphi %v1780, %v2185
          %v1910 = vphi %v1781, %v2186
          %v1911 = vphi %v1782, %v2187
          %v1912 = vphi %v1783, %v2188
          %v1913 = vphi %v1784, %v2189
          %v1914 = vphi %v1785, %v2190
          %v1915 = vphi %v1786, %v2191
          %v1916 = vphi %v243, %v2412
          %v1917 = vphi %v248, %v2413
          %v1918 = vphi %v253, %v2414
          %v1919 = vphi %v258, %v2415
        $region50: #{tpu_custom_call.1} parent=35 // loop_header_branch
          %1898 = sbr.rel (%p1896) target = $region54
        $region51: #{tpu_custom_call.1} parent=35 // loop_body
          %1920 = vmax.xlane.f32.xlu0 %v1900
          %v1921 = vpop.xlane.xlu0 %1920
          %1922 = vmax.xlane.f32.xlu0 %v1901
          %v1923 = vpop.xlane.xlu0 %1922
          %1924 = vmax.xlane.f32.xlu0 %v1902
          %v1925 = vpop.xlane.xlu0 %1924
          %1926 = vmax.xlane.f32.xlu0 %v1903
          %v1927 = vpop.xlane.xlu0 %1926
          %1928 = vmax.xlane.f32.xlu0 %v1904
          %v1929 = vpop.xlane.xlu0 %1928
          %1930 = vmax.xlane.f32.xlu0 %v1905
          %v1931 = vpop.xlane.xlu0 %1930
          %1932 = vmax.xlane.f32.xlu0 %v1906
          %v1933 = vpop.xlane.xlu0 %1932
          %1934 = vmax.xlane.f32.xlu0 %v1907
          %v1935 = vpop.xlane.xlu0 %1934
          %1936 = vmax.xlane.f32.xlu0 %v1908
          %v1937 = vpop.xlane.xlu0 %1936
          %1938 = vmax.xlane.f32.xlu0 %v1909
          %v1939 = vpop.xlane.xlu0 %1938
          %1940 = vmax.xlane.f32.xlu0 %v1910
          %v1941 = vpop.xlane.xlu0 %1940
          %1942 = vmax.xlane.f32.xlu0 %v1911
          %v1943 = vpop.xlane.xlu0 %1942
          %1944 = vmax.xlane.f32.xlu0 %v1912
          %v1945 = vpop.xlane.xlu0 %1944
          %1946 = vmax.xlane.f32.xlu0 %v1913
          %v1947 = vpop.xlane.xlu0 %1946
          %1948 = vmax.xlane.f32.xlu0 %v1914
          %v1949 = vpop.xlane.xlu0 %1948
          %1950 = vmax.xlane.f32.xlu0 %v1915
          %v1951 = vpop.xlane.xlu0 %1950
          %vm1952 = vcmp.ge.f32.partialorder %v1900, %v1921
          %vm1953 = vcmp.ge.f32.partialorder %v1901, %v1923
          %vm1954 = vcmp.ge.f32.partialorder %v1902, %v1925
          %vm1955 = vcmp.ge.f32.partialorder %v1903, %v1927
          %vm1956 = vcmp.ge.f32.partialorder %v1904, %v1929
          %vm1957 = vcmp.ge.f32.partialorder %v1905, %v1931
          %vm1958 = vcmp.ge.f32.partialorder %v1906, %v1933
          %vm1959 = vcmp.ge.f32.partialorder %v1907, %v1935
          %vm1960 = vcmp.ge.f32.partialorder %v1908, %v1937
          %vm1961 = vcmp.ge.f32.partialorder %v1909, %v1939
          %vm1962 = vcmp.ge.f32.partialorder %v1910, %v1941
          %vm1963 = vcmp.ge.f32.partialorder %v1911, %v1943
          %vm1964 = vcmp.ge.f32.partialorder %v1912, %v1945
          %vm1965 = vcmp.ge.f32.partialorder %v1913, %v1947
          %vm1966 = vcmp.ge.f32.partialorder %v1914, %v1949
          %vm1967 = vcmp.ge.f32.partialorder %v1915, %v1951
          %v1968 = vsel %vm1952, -1e+30, %v1900
          %v1969 = vsel %vm1953, -1e+30, %v1901
          %v1970 = vsel %vm1954, -1e+30, %v1902
          %v1971 = vsel %vm1955, -1e+30, %v1903
          %v1972 = vsel %vm1956, -1e+30, %v1904
          %v1973 = vsel %vm1957, -1e+30, %v1905
          %v1974 = vsel %vm1958, -1e+30, %v1906
          %v1975 = vsel %vm1959, -1e+30, %v1907
          %v1976 = vsel %vm1960, -1e+30, %v1908
          %v1977 = vsel %vm1961, -1e+30, %v1909
          %v1978 = vsel %vm1962, -1e+30, %v1910
          %v1979 = vsel %vm1963, -1e+30, %v1911
          %v1980 = vsel %vm1964, -1e+30, %v1912
          %v1981 = vsel %vm1965, -1e+30, %v1913
          %v1982 = vsel %vm1966, -1e+30, %v1914
          %v1983 = vsel %vm1967, -1e+30, %v1915
          %v1984 = vsel %vm1952, 1, 0
          %v1985 = vsel %vm1953, 1, 0
          %v1986 = vsel %vm1954, 1, 0
          %v1987 = vsel %vm1955, 1, 0
          %v1988 = vsel %vm1956, 1, 0
          %v1989 = vsel %vm1957, 1, 0
          %v1990 = vsel %vm1958, 1, 0
          %v1991 = vsel %vm1959, 1, 0
          %v1992 = vsel %vm1960, 1, 0
          %v1993 = vsel %vm1961, 1, 0
          %v1994 = vsel %vm1962, 1, 0
          %v1995 = vsel %vm1963, 1, 0
          %v1996 = vsel %vm1964, 1, 0
          %v1997 = vsel %vm1965, 1, 0
          %v1998 = vsel %vm1966, 1, 0
          %v1999 = vsel %vm1967, 1, 0
          %v2000 = vcvt.s32.f32 %v1984
          %v2001 = vcvt.s32.f32 %v1985
          %v2002 = vcvt.s32.f32 %v1986
          %v2003 = vcvt.s32.f32 %v1987
          %v2004 = vcvt.s32.f32 %v1988
          %v2005 = vcvt.s32.f32 %v1989
          %v2006 = vcvt.s32.f32 %v1990
          %v2007 = vcvt.s32.f32 %v1991
          %v2008 = vcvt.s32.f32 %v1992
          %v2009 = vcvt.s32.f32 %v1993
          %v2010 = vcvt.s32.f32 %v1994
          %v2011 = vcvt.s32.f32 %v1995
          %v2012 = vcvt.s32.f32 %v1996
          %v2013 = vcvt.s32.f32 %v1997
          %v2014 = vcvt.s32.f32 %v1998
          %v2015 = vcvt.s32.f32 %v1999
          %v2016 = vpack.c.bf16 %v2001, %v2000
          %v2017 = vpack.c.bf16 %v2003, %v2002
          %v2018 = vpack.c.bf16 %v2005, %v2004
          %v2019 = vpack.c.bf16 %v2007, %v2006
          %v2020 = vpack.c.bf16 %v2009, %v2008
          %v2021 = vpack.c.bf16 %v2011, %v2010
          %v2022 = vpack.c.bf16 %v2013, %v2012
          %v2023 = vpack.c.bf16 %v2015, %v2014
          %2024 = vmax.xlane.f32.xlu0 %v1968
          %v2025 = vpop.xlane.xlu0 %2024
          %2026 = vmax.xlane.f32.xlu0 %v1969
          %v2027 = vpop.xlane.xlu0 %2026
          %2028 = vmax.xlane.f32.xlu0 %v1970
          %v2029 = vpop.xlane.xlu0 %2028
          %2030 = vmax.xlane.f32.xlu0 %v1971
          %v2031 = vpop.xlane.xlu0 %2030
          %2032 = vmax.xlane.f32.xlu0 %v1972
          %v2033 = vpop.xlane.xlu0 %2032
          %2034 = vmax.xlane.f32.xlu0 %v1973
          %v2035 = vpop.xlane.xlu0 %2034
          %2036 = vmax.xlane.f32.xlu0 %v1974
          %v2037 = vpop.xlane.xlu0 %2036
          %2038 = vmax.xlane.f32.xlu0 %v1975
          %v2039 = vpop.xlane.xlu0 %2038
          %2040 = vmax.xlane.f32.xlu0 %v1976
          %v2041 = vpop.xlane.xlu0 %2040
          %2042 = vmax.xlane.f32.xlu0 %v1977
          %v2043 = vpop.xlane.xlu0 %2042
          %2044 = vmax.xlane.f32.xlu0 %v1978
          %v2045 = vpop.xlane.xlu0 %2044
          %2046 = vmax.xlane.f32.xlu0 %v1979
          %v2047 = vpop.xlane.xlu0 %2046
          %2048 = vmax.xlane.f32.xlu0 %v1980
          %v2049 = vpop.xlane.xlu0 %2048
          %2050 = vmax.xlane.f32.xlu0 %v1981
          %v2051 = vpop.xlane.xlu0 %2050
          %2052 = vmax.xlane.f32.xlu0 %v1982
          %v2053 = vpop.xlane.xlu0 %2052
          %2054 = vmax.xlane.f32.xlu0 %v1983
          %v2055 = vpop.xlane.xlu0 %2054
          %vm2056 = vcmp.ge.f32.partialorder %v1968, %v2025
          %vm2057 = vcmp.ge.f32.partialorder %v1969, %v2027
          %vm2058 = vcmp.ge.f32.partialorder %v1970, %v2029
          %vm2059 = vcmp.ge.f32.partialorder %v1971, %v2031
          %vm2060 = vcmp.ge.f32.partialorder %v1972, %v2033
          %vm2061 = vcmp.ge.f32.partialorder %v1973, %v2035
          %vm2062 = vcmp.ge.f32.partialorder %v1974, %v2037
          %vm2063 = vcmp.ge.f32.partialorder %v1975, %v2039
          %vm2064 = vcmp.ge.f32.partialorder %v1976, %v2041
          %vm2065 = vcmp.ge.f32.partialorder %v1977, %v2043
          %vm2066 = vcmp.ge.f32.partialorder %v1978, %v2045
          %vm2067 = vcmp.ge.f32.partialorder %v1979, %v2047
          %vm2068 = vcmp.ge.f32.partialorder %v1980, %v2049
          %vm2069 = vcmp.ge.f32.partialorder %v1981, %v2051
          %vm2070 = vcmp.ge.f32.partialorder %v1982, %v2053
          %vm2071 = vcmp.ge.f32.partialorder %v1983, %v2055
          %v2072 = vsel %vm2056, -1e+30, %v1968
          %v2073 = vsel %vm2057, -1e+30, %v1969
          %v2074 = vsel %vm2058, -1e+30, %v1970
          %v2075 = vsel %vm2059, -1e+30, %v1971
          %v2076 = vsel %vm2060, -1e+30, %v1972
          %v2077 = vsel %vm2061, -1e+30, %v1973
          %v2078 = vsel %vm2062, -1e+30, %v1974
          %v2079 = vsel %vm2063, -1e+30, %v1975
          %v2080 = vsel %vm2064, -1e+30, %v1976
          %v2081 = vsel %vm2065, -1e+30, %v1977
          %v2082 = vsel %vm2066, -1e+30, %v1978
          %v2083 = vsel %vm2067, -1e+30, %v1979
          %v2084 = vsel %vm2068, -1e+30, %v1980
          %v2085 = vsel %vm2069, -1e+30, %v1981
          %v2086 = vsel %vm2070, -1e+30, %v1982
          %v2087 = vsel %vm2071, -1e+30, %v1983
          %v2088 = vsel %vm2056, 1, 0
          %v2089 = vsel %vm2057, 1, 0
          %v2090 = vsel %vm2058, 1, 0
          %v2091 = vsel %vm2059, 1, 0
          %v2092 = vsel %vm2060, 1, 0
          %v2093 = vsel %vm2061, 1, 0
          %v2094 = vsel %vm2062, 1, 0
          %v2095 = vsel %vm2063, 1, 0
          %v2096 = vsel %vm2064, 1, 0
          %v2097 = vsel %vm2065, 1, 0
          %v2098 = vsel %vm2066, 1, 0
          %v2099 = vsel %vm2067, 1, 0
          %v2100 = vsel %vm2068, 1, 0
          %v2101 = vsel %vm2069, 1, 0
          %v2102 = vsel %vm2070, 1, 0
          %v2103 = vsel %vm2071, 1, 0
          %v2104 = vcvt.s32.f32 %v2088
          %v2105 = vcvt.s32.f32 %v2089
          %v2106 = vcvt.s32.f32 %v2090
          %v2107 = vcvt.s32.f32 %v2091
          %v2108 = vcvt.s32.f32 %v2092
          %v2109 = vcvt.s32.f32 %v2093
          %v2110 = vcvt.s32.f32 %v2094
          %v2111 = vcvt.s32.f32 %v2095
          %v2112 = vcvt.s32.f32 %v2096
          %v2113 = vcvt.s32.f32 %v2097
          %v2114 = vcvt.s32.f32 %v2098
          %v2115 = vcvt.s32.f32 %v2099
          %v2116 = vcvt.s32.f32 %v2100
          %v2117 = vcvt.s32.f32 %v2101
          %v2118 = vcvt.s32.f32 %v2102
          %v2119 = vcvt.s32.f32 %v2103
          %v2120 = vpack.c.bf16 %v2105, %v2104
          %v2121 = vpack.c.bf16 %v2107, %v2106
          %v2122 = vpack.c.bf16 %v2109, %v2108
          %v2123 = vpack.c.bf16 %v2111, %v2110
          %v2124 = vpack.c.bf16 %v2113, %v2112
          %v2125 = vpack.c.bf16 %v2115, %v2114
          %v2126 = vpack.c.bf16 %v2117, %v2116
          %v2127 = vpack.c.bf16 %v2119, %v2118
          %2128 = vmax.xlane.f32.xlu0 %v2072
          %v2129 = vpop.xlane.xlu0 %2128
          %2130 = vmax.xlane.f32.xlu0 %v2073
          %v2131 = vpop.xlane.xlu0 %2130
          %2132 = vmax.xlane.f32.xlu0 %v2074
          %v2133 = vpop.xlane.xlu0 %2132
          %2134 = vmax.xlane.f32.xlu0 %v2075
          %v2135 = vpop.xlane.xlu0 %2134
          %2136 = vmax.xlane.f32.xlu0 %v2076
          %v2137 = vpop.xlane.xlu0 %2136
          %2138 = vmax.xlane.f32.xlu0 %v2077
          %v2139 = vpop.xlane.xlu0 %2138
          %2140 = vmax.xlane.f32.xlu0 %v2078
          %v2141 = vpop.xlane.xlu0 %2140
          %2142 = vmax.xlane.f32.xlu0 %v2079
          %v2143 = vpop.xlane.xlu0 %2142
          %2144 = vmax.xlane.f32.xlu0 %v2080
          %v2145 = vpop.xlane.xlu0 %2144
          %2146 = vmax.xlane.f32.xlu0 %v2081
          %v2147 = vpop.xlane.xlu0 %2146
          %2148 = vmax.xlane.f32.xlu0 %v2082
          %v2149 = vpop.xlane.xlu0 %2148
          %2150 = vmax.xlane.f32.xlu0 %v2083
          %v2151 = vpop.xlane.xlu0 %2150
          %2152 = vmax.xlane.f32.xlu0 %v2084
          %v2153 = vpop.xlane.xlu0 %2152
          %2154 = vmax.xlane.f32.xlu0 %v2085
          %v2155 = vpop.xlane.xlu0 %2154
          %2156 = vmax.xlane.f32.xlu0 %v2086
          %v2157 = vpop.xlane.xlu0 %2156
          %2158 = vmax.xlane.f32.xlu0 %v2087
          %v2159 = vpop.xlane.xlu0 %2158
          %vm2160 = vcmp.ge.f32.partialorder %v2072, %v2129
          %vm2161 = vcmp.ge.f32.partialorder %v2073, %v2131
          %vm2162 = vcmp.ge.f32.partialorder %v2074, %v2133
          %vm2163 = vcmp.ge.f32.partialorder %v2075, %v2135
          %vm2164 = vcmp.ge.f32.partialorder %v2076, %v2137
          %vm2165 = vcmp.ge.f32.partialorder %v2077, %v2139
          %vm2166 = vcmp.ge.f32.partialorder %v2078, %v2141
          %vm2167 = vcmp.ge.f32.partialorder %v2079, %v2143
          %vm2168 = vcmp.ge.f32.partialorder %v2080, %v2145
          %vm2169 = vcmp.ge.f32.partialorder %v2081, %v2147
          %vm2170 = vcmp.ge.f32.partialorder %v2082, %v2149
          %vm2171 = vcmp.ge.f32.partialorder %v2083, %v2151
          %vm2172 = vcmp.ge.f32.partialorder %v2084, %v2153
          %vm2173 = vcmp.ge.f32.partialorder %v2085, %v2155
          %vm2174 = vcmp.ge.f32.partialorder %v2086, %v2157
          %vm2175 = vcmp.ge.f32.partialorder %v2087, %v2159
          %v2176 = vsel %vm2160, -1e+30, %v2072
          %v2177 = vsel %vm2161, -1e+30, %v2073
          %v2178 = vsel %vm2162, -1e+30, %v2074
          %v2179 = vsel %vm2163, -1e+30, %v2075
          %v2180 = vsel %vm2164, -1e+30, %v2076
          %v2181 = vsel %vm2165, -1e+30, %v2077
          %v2182 = vsel %vm2166, -1e+30, %v2078
          %v2183 = vsel %vm2167, -1e+30, %v2079
          %v2184 = vsel %vm2168, -1e+30, %v2080
          %v2185 = vsel %vm2169, -1e+30, %v2081
          %v2186 = vsel %vm2170, -1e+30, %v2082
          %v2187 = vsel %vm2171, -1e+30, %v2083
          %v2188 = vsel %vm2172, -1e+30, %v2084
          %v2189 = vsel %vm2173, -1e+30, %v2085
          %v2190 = vsel %vm2174, -1e+30, %v2086
          %v2191 = vsel %vm2175, -1e+30, %v2087
          %v2192 = vsel %vm2160, 1, 0
          %v2193 = vsel %vm2161, 1, 0
          %v2194 = vsel %vm2162, 1, 0
          %v2195 = vsel %vm2163, 1, 0
          %v2196 = vsel %vm2164, 1, 0
          %v2197 = vsel %vm2165, 1, 0
          %v2198 = vsel %vm2166, 1, 0
          %v2199 = vsel %vm2167, 1, 0
          %v2200 = vsel %vm2168, 1, 0
          %v2201 = vsel %vm2169, 1, 0
          %v2202 = vsel %vm2170, 1, 0
          %v2203 = vsel %vm2171, 1, 0
          %v2204 = vsel %vm2172, 1, 0
          %v2205 = vsel %vm2173, 1, 0
          %v2206 = vsel %vm2174, 1, 0
          %v2207 = vsel %vm2175, 1, 0
          %v2208 = vcvt.s32.f32 %v2192
          %v2209 = vcvt.s32.f32 %v2193
          %v2210 = vcvt.s32.f32 %v2194
          %v2211 = vcvt.s32.f32 %v2195
          %v2212 = vcvt.s32.f32 %v2196
          %v2213 = vcvt.s32.f32 %v2197
          %v2214 = vcvt.s32.f32 %v2198
          %v2215 = vcvt.s32.f32 %v2199
          %v2216 = vcvt.s32.f32 %v2200
          %v2217 = vcvt.s32.f32 %v2201
          %v2218 = vcvt.s32.f32 %v2202
          %v2219 = vcvt.s32.f32 %v2203
          %v2220 = vcvt.s32.f32 %v2204
          %v2221 = vcvt.s32.f32 %v2205
          %v2222 = vcvt.s32.f32 %v2206
          %v2223 = vcvt.s32.f32 %v2207
          %v2224 = vpack.c.bf16 %v2209, %v2208
          %v2225 = vpack.c.bf16 %v2211, %v2210
          %v2226 = vpack.c.bf16 %v2213, %v2212
          %v2227 = vpack.c.bf16 %v2215, %v2214
          %v2228 = vpack.c.bf16 %v2217, %v2216
          %v2229 = vpack.c.bf16 %v2219, %v2218
          %v2230 = vpack.c.bf16 %v2221, %v2220
          %v2231 = vpack.c.bf16 %v2223, %v2222
          %2232 = vmatprep.subr.bf16.mxu0 %v2120
          %2233 = vmatpush1.bf16.xpose.msra.mxu0 %v2016
          %2234 = vmatprep.subr.bf16.mxu0 %v2121
          %2235 = vmatpush1.bf16.xpose.msra.mxu0 %v2017
          %2236 = vmatprep.subr.bf16.mxu0 %v2122
          %2237 = vmatpush1.bf16.xpose.msra.mxu0 %v2018
          %2238 = vmatprep.subr.bf16.mxu0 %v2123
          %2239 = vmatpush1.bf16.xpose.msra.mxu0 %v2019
          %2240 = vmatprep.subr.bf16.mxu0 %v2124
          %2241 = vmatpush1.bf16.xpose.msra.mxu0 %v2020
          %2242 = vmatprep.subr.bf16.mxu0 %v2125
          %2243 = vmatpush1.bf16.xpose.msra.mxu0 %v2021
          %2244 = vmatprep.subr.bf16.mxu0 %v2126
          %2245 = vmatpush1.bf16.xpose.msra.mxu0 %v2022
          %2246 = vmatprep.subr.bf16.mxu0 %v2127
          %2247 = vmatpush1.bf16.xpose.msra.mxu0 %v2023
          %2248 = vmatprep.subr.bf16.mxu0 0
          %2249 = vmatpush1.bf16.xpose.msra.mxu0 0
          %2250 = vmatprep.subr.bf16.mxu0 0
          %2251 = vmatpush1.bf16.xpose.msra.mxu0 0
          %2252 = vmatprep.subr.bf16.mxu0 0
          %2253 = vmatpush1.bf16.xpose.msra.mxu0 0
          %2254 = vmatprep.subr.bf16.mxu0 0
          %2255 = vmatpush1.bf16.xpose.msra.mxu0 0
          %2256 = vmatprep.subr.bf16.mxu0 0
          %2257 = vmatpush1.bf16.xpose.msra.mxu0 0
          %2258 = vmatprep.subr.bf16.mxu0 0
          %2259 = vmatpush1.bf16.xpose.msra.mxu0 0
          %2260 = vmatprep.subr.bf16.mxu0 0
          %2261 = vmatpush1.bf16.xpose.msra.mxu0 0
          %2262 = vmatprep.subr.bf16.mxu0 0
          %2263 = vmatpush1.bf16.xpose.msra.mxu0 0
          %2264 = vmatprep.mubr.bf16.mxu0 %v1890
          %2265 = vmatmul.mubr.bf16.gmra.mrb[0].mxu0 %v1888
          %v2266 = vpop.f32.mrb[0].mxu0
          %v2267 = vadd.f32 0.0, %v2266
          %v2268 = vpop.f32.mrb[0].mxu0
          %v2269 = vpop.f32.mrb[0].mxu0
          %v2270 = vadd.f32 0.0, %v2269
          %v2271 = vpop.f32.mrb[0].mxu0
          %2272 = vmatprep.mubr.bf16.mxu0 %v1891
          %2273 = vmatmul.mubr.bf16.gmra.mrb[0].mxu0 %v1889
          %v2274 = vpop.f32.mrb[0].mxu0
          %v2275 = vadd.f32 0.0, %v2274
          %v2276 = vpop.f32.mrb[0].mxu0
          %v2277 = vpop.f32.mrb[0].mxu0
          %v2278 = vadd.f32 0.0, %v2277
          %v2279 = vpop.f32.mrb[0].mxu0
          %2280 = vdwg.mxu0
          %2281 = vmatprep.subr.bf16.mxu0 0
          %2282 = vmatpush1.bf16.xpose.msra.mxu0 %v2224
          %2283 = vmatprep.subr.bf16.mxu0 0
          %2284 = vmatpush1.bf16.xpose.msra.mxu0 %v2225
          %2285 = vmatprep.subr.bf16.mxu0 0
          %2286 = vmatpush1.bf16.xpose.msra.mxu0 %v2226
          %2287 = vmatprep.subr.bf16.mxu0 0
          %2288 = vmatpush1.bf16.xpose.msra.mxu0 %v2227
          %2289 = vmatprep.subr.bf16.mxu0 0
          %2290 = vmatpush1.bf16.xpose.msra.mxu0 %v2228
          %2291 = vmatprep.subr.bf16.mxu0 0
          %2292 = vmatpush1.bf16.xpose.msra.mxu0 %v2229
          %2293 = vmatprep.subr.bf16.mxu0 0
          %2294 = vmatpush1.bf16.xpose.msra.mxu0 %v2230
          %2295 = vmatprep.subr.bf16.mxu0 0
          %2296 = vmatpush1.bf16.xpose.msra.mxu0 %v2231
          %2297 = vmatprep.subr.bf16.mxu0 0
          %2298 = vmatpush1.bf16.xpose.msra.mxu0 0
          %2299 = vmatprep.subr.bf16.mxu0 0
          %2300 = vmatpush1.bf16.xpose.msra.mxu0 0
          %2301 = vmatprep.subr.bf16.mxu0 0
          %2302 = vmatpush1.bf16.xpose.msra.mxu0 0
          %2303 = vmatprep.subr.bf16.mxu0 0
          %2304 = vmatpush1.bf16.xpose.msra.mxu0 0
          %2305 = vmatprep.subr.bf16.mxu0 0
          %2306 = vmatpush1.bf16.xpose.msra.mxu0 0
          %2307 = vmatprep.subr.bf16.mxu0 0
          %2308 = vmatpush1.bf16.xpose.msra.mxu0 0
          %2309 = vmatprep.subr.bf16.mxu0 0
          %2310 = vmatpush1.bf16.xpose.msra.mxu0 0
          %2311 = vmatprep.subr.bf16.mxu0 0
          %2312 = vmatpush1.bf16.xpose.msra.mxu0 0
          %2313 = vmatprep.mubr.bf16.mxu0 0
          %2314 = vmatmul.mubr.bf16.gmra.mrb[0].mxu0 %v1892
          %v2315 = vpop.f32.mrb[0].mxu0
          %v2316 = vadd.f32 %v2267, %v2315
          %v2317 = vpop.f32.mrb[0].mxu0
          %v2318 = vpop.f32.mrb[0].mxu0
          %v2319 = vadd.f32 %v2270, %v2318
          %v2320 = vpop.f32.mrb[0].mxu0
          %2321 = vmatprep.mubr.bf16.mxu0 0
          %2322 = vmatmul.mubr.bf16.gmra.mrb[0].mxu0 %v1893
          %v2323 = vpop.f32.mrb[0].mxu0
          %v2324 = vadd.f32 %v2275, %v2323
          %v2325 = vpop.f32.mrb[0].mxu0
          %v2326 = vpop.f32.mrb[0].mxu0
          %v2327 = vadd.f32 %v2278, %v2326
          %v2328 = vpop.f32.mrb[0].mxu0
          %2329 = vdwg.mxu0
          %v2330 = vsub.f32 %v1884, %v2316
          %v2331 = vsub.f32 %v1885, %v2319
          %v2332 = vsub.f32 %v1886, %v2324
          %v2333 = vsub.f32 %v1887, %v2327
          %v2334 = vmax.f32 %v2330, 0.0
          %v2335 = vmax.f32 %v2331, 0.0
          %v2336 = vmax.f32 %v2332, 0.0
          %v2337 = vmax.f32 %v2333, 0.0
          %v2338 = vpack.c.bf16 %v2335, %v2334
          %v2339 = vpack.c.bf16 %v2337, %v2336
          %s2340 = smul.u32 %s1895, 4
          %s2341 = smul.addr %s2340, 4
          %s2342 = scalar_lea.vmem %s2, %s2341
          %v2343 = vld [vmem:[%s2342] sm:$0xf]
          %v2344 = vld [vmem:[%s2342 + $0x4] sm:$0xf]
          %v2345 = vld [vmem:[%s2342 + $0x8] sm:$0xf]
          %v2346 = vld [vmem:[%s2342 + $0xc] sm:$0xf]
          %v2351 = vunpack.c.l.b16 %v2343
          %v2352 = vunpack.c.l.b16 %v2344
          %v2353 = vunpack.c.l.b16 %v2345
          %v2354 = vunpack.c.l.b16 %v2346
          %v2355 = vpack.c.b16 %v2352, %v2351
          %v2356 = vpack.c.b16 %v2354, %v2353
          %v2358 = vsel %vm311, %v2355, 0
          %v2361 = vsel %vm311, %v2356, 0
          %2363 = vmatprep.subr.bf16.mxu0 0
          %2364 = vmatpush1.bf16.msra.mxu0 %v2338
          %2365 = vmatprep.subr.bf16.mxu0 0
          %2366 = vmatpush1.bf16.msra.mxu0 %v2339
          %2367 = vmatprep.subr.bf16.mxu0 0
          %2368 = vmatpush1.bf16.msra.mxu0 0
          %2369 = vmatprep.subr.bf16.mxu0 0
          %2370 = vmatpush1.bf16.msra.mxu0 0
          %2371 = vmatprep.subr.bf16.mxu0 0
          %2372 = vmatpush1.bf16.msra.mxu0 0
          %2373 = vmatprep.subr.bf16.mxu0 0
          %2374 = vmatpush1.bf16.msra.mxu0 0
          %2375 = vmatprep.subr.bf16.mxu0 0
          %2376 = vmatpush1.bf16.msra.mxu0 0
          %2377 = vmatprep.subr.bf16.mxu0 0
          %2378 = vmatpush1.bf16.msra.mxu0 0
          %2379 = vmatprep.subr.bf16.mxu0 0
          %2380 = vmatpush1.bf16.msra.mxu0 0
          %2381 = vmatprep.subr.bf16.mxu0 0
          %2382 = vmatpush1.bf16.msra.mxu0 0
          %2383 = vmatprep.subr.bf16.mxu0 0
          %2384 = vmatpush1.bf16.msra.mxu0 0
          %2385 = vmatprep.subr.bf16.mxu0 0
          %2386 = vmatpush1.bf16.msra.mxu0 0
          %2387 = vmatprep.subr.bf16.mxu0 0
          %2388 = vmatpush1.bf16.msra.mxu0 0
          %2389 = vmatprep.subr.bf16.mxu0 0
          %2390 = vmatpush1.bf16.msra.mxu0 0
          %2391 = vmatprep.subr.bf16.mxu0 0
          %2392 = vmatpush1.bf16.msra.mxu0 0
          %2393 = vmatprep.subr.bf16.mxu0 0
          %2394 = vmatpush1.bf16.msra.mxu0 0
          %2395 = vmatprep.mubr.bf16.mxu0 0
          %2396 = vmatmul.mubr.bf16.gmra.mrb[0].mxu0 %v2358
          %v2397 = vpop.f32.mrb[0].mxu0
          %v2398 = vadd.f32 0.0, %v2397
          %v2399 = vpop.f32.mrb[0].mxu0
          %v2400 = vpop.f32.mrb[0].mxu0
          %v2401 = vadd.f32 0.0, %v2400
          %v2402 = vpop.f32.mrb[0].mxu0
          %2403 = vmatprep.mubr.bf16.mxu0 0
          %2404 = vmatmul.mubr.bf16.gmra.mrb[0].mxu0 %v2361
          %v2405 = vpop.f32.mrb[0].mxu0
          %v2406 = vadd.f32 0.0, %v2405
          %v2407 = vpop.f32.mrb[0].mxu0
          %v2408 = vpop.f32.mrb[0].mxu0
          %v2409 = vadd.f32 0.0, %v2408
          %v2410 = vpop.f32.mrb[0].mxu0
          %2411 = vdwg.mxu0
          %v2412 = vadd.f32 %v1916, %v2398
          %v2413 = vadd.f32 %v1917, %v2401
          %v2414 = vadd.f32 %v1918, %v2406
          %v2415 = vadd.f32 %v1919, %v2409
        $region52: #{tpu_custom_call.1} parent=35 // loop_footer
          %s1899 = sadd.s32 1, %s1895
        $region53: #{tpu_custom_call.1} parent=35 // loop_footer_branch
          %1894 = sbr.rel target = $region49
        $region54: #{tpu_custom_call.1} parent=35 // loop_exit
          _
        %v2416 = vmax.f32 %v1916, 0.0
        %v2417 = vmax.f32 %v1917, 0.0
        %v2418 = vmax.f32 %v1918, 0.0
        %v2419 = vmax.f32 %v1919, 0.0
        %s2420 = scalar_lea.vmem %s216, 32 [#allocation5]
        %2421 = vst [vmem:[%s2420] sm:$0xff] %v2416
        %2422 = vst [vmem:[%s2420 + $0x8] sm:$0xff] %v2417
        %2423 = vst [vmem:[%s2420 + $0x10] sm:$0xff] %v2418
        %2424 = vst [vmem:[%s2420 + $0x18] sm:$0xff] %v2419
        %s2425 = sand.u32 %s118, 1
        %s2426 = scalar_lea.sflag [#allocation4], %s2425
        %s2427 = sand.u32 %s118, 1
        %s2428 = smul.addr %s2427, 64
        %s2429 = scalar_lea.vmem [#allocation5], %s2428
        // Predicated region
        $region55: #{tpu_custom_call.1} parent=35 // pred_check
          %p2430 = pneg %p128
        $region56: #{tpu_custom_call.1} parent=35 // pred_check_branch
          %2432 = sbr.rel (%p2430) target = $region58
        $region57: #{tpu_custom_call.1} parent=35 // pred_region
          %s2433 = smul.u32 2, %s21
          %s2435 = ssub.s32 1024, 1024
          %2436 = vsyncadd %s2426, %s2435
          %s2437 = smul.addr %s2433, 4
          %s2438 = smul.addr %s2437, 128
          %s2439 = scalar_lea.hbm %s4, %s2438
          %s2440 = sshll.u32 %s2429, 4
          %s2441 = int_to_ptr.vmem [resolvable:$true] %s2440
          %2446 = dma.vmem_to_hbm [thread:$0]  %s2441, 1024, %s2439, %s2426, 128, 128, 8
        $region58: #{tpu_custom_call.1} parent=35 // pred_fallthru
          _
      $region36: #{tpu_custom_call.1} parent=5 // pred_fallthru
        _
      %p2447 = scmp.le.s32.totalorder 2, %s16
      // Predicated region
      $region59: #{tpu_custom_call.1} parent=5 // pred_check
        %p2448 = pneg %p2447
      $region60: #{tpu_custom_call.1} parent=5 // pred_check_branch
        %2450 = sbr.rel (%p2448) target = $region62
      $region61: #{tpu_custom_call.1} parent=5 // pred_region
        %s2451 = ssub.s32 %s16, 2
        // Predicated region
        $region63: #{tpu_custom_call.1} parent=61 // pred_check
          %p2452 = pneg %p134
        $region64: #{tpu_custom_call.1} parent=61 // pred_check_branch
          %2454 = sbr.rel (%p2452) target = $region66
        $region65: #{tpu_custom_call.1} parent=61 // pred_region
          %s2455 = sand.u32 %s119, 1
          %s2456 = scalar_lea.sflag [#allocation4], %s2455
          %s2457 = sand.u32 %s119, 1
          %s2458 = smul.addr %s2457, 64
          %s2459 = scalar_lea.vmem [#allocation5], %s2458
          %2460 = dma.done %s2456, 1024
        $region66: #{tpu_custom_call.1} parent=61 // pred_fallthru
          _
      $region62: #{tpu_custom_call.1} parent=5 // pred_fallthru
        _
    $region6: #{tpu_custom_call.1} parent=1 // loop_footer
      %s20 = sadd.s32 1, %s16
    $region7: #{tpu_custom_call.1} parent=1 // loop_footer_branch
      %15 = sbr.rel target = $region3
    $region8: #{tpu_custom_call.1} parent=1 // loop_exit
      _
    %2461 = vsyncpa [#allocation3], 1
    %s2462 = scalar_lea.sflag [#allocation3], 1
    %2463 = vsyncpa %s2462, 1
    %2464 = vsyncpa [#allocation4], 1
    %s2465 = scalar_lea.sflag [#allocation4], 1
    %2466 = vsyncpa %s2465, 1

</llo_original>
